<compile_context>
chip_gen: v7x
topology: tpu7x:2x2x1
jax: 0.10.0
libtpu: 0.0.40
codegen_flags: <defaults>
</compile_context>

<pallas_src>
import jax
import jax.numpy as jnp
from jax import lax
from jax.experimental import pallas as pl
from jax.experimental.pallas import tpu as pltpu


C_PAD = 128  # lane-dense output channels -> unmasked 128-wide stores


def _round_up(x, m):
    return (x + m - 1) // m * m


def _make_stem_kernel(KH, K2P, Ho, Wo, Hp, Wp, Hh):
    """Fused 7x7/s2 conv + BN(inference) + ReLU + 3x3/s2 maxpool for 1 image."""

    def kernel(b_ref, w_ref, bias_ref, o_ref, yp_ref, wm_ref):
        # b_ref : (1, 2*Hh, Wo, K2P) bf16  H-parity-split, KW*Cin-unrolled input
        # w_ref : (KH, K2P, C_PAD)   bf16  BN scale already folded in
        # bias  : (1, C_PAD)         f32   folded BN bias
        # o_ref : (1, Hp, Wp, C_PAD) f32   pooled output
        # yp_ref: (Ho+2, Wo+2, C_PAD) f32  zero-padded conv output (scratch)
        # wm_ref: (Ho+2, Wp,   C_PAD) f32  separable-pool W pass     (scratch)

        # ---- conv: 7 vertical-tap matmuls, taps gathered in VMEM ----
        acc = jnp.zeros((Ho * Wo, C_PAD), jnp.float32)
        for kh in range(KH):
            p, d = kh % 2, kh // 2
            a = b_ref[0, p * Hh + d:p * Hh + d + Ho, :, :].reshape(Ho * Wo, K2P)
            acc = acc + jnp.dot(a, w_ref[kh],
                                preferred_element_type=jnp.float32)

        # ---- fused BatchNorm bias + ReLU ----
        y = jnp.maximum(acc + bias_ref[...], 0.0)

        # ---- 3x3/s2 maxpool, pad=1 (zero pad is max-safe because y >= 0) ----
        yp_ref[...] = jnp.zeros_like(yp_ref)
        yp_ref[1:Ho + 1, 1:Wo + 1, :] = y.reshape(Ho, Wo, C_PAD)
        # separable: max over the 3 W taps ...
        wm_ref[...] = jnp.maximum(
            jnp.maximum(yp_ref[:, pl.ds(0, Wp, 2), :],
                        yp_ref[:, pl.ds(1, Wp, 2), :]),
            yp_ref[:, pl.ds(2, Wp, 2), :])
        # ... then max over the 3 H taps.
        o_ref[0] = jnp.maximum(
            jnp.maximum(wm_ref[pl.ds(0, Hp, 2), :, :],
                        wm_ref[pl.ds(1, Hp, 2), :, :]),
            wm_ref[pl.ds(2, Hp, 2), :, :]).astype(o_ref.dtype)

    return kernel


def senet_stem_forward(x_nchw, w_oihw, gamma, beta, run_mean, run_var, eps=1e-5):
    N, Cin, H, W = x_nchw.shape
    Cout, _, KH, KW = w_oihw.shape
    stride, pad = 2, KH // 2
    Ho = (H + 2 * pad - KH) // stride + 1
    Wo = (W + 2 * pad - KW) // stride + 1
    Hp = (Ho - 1) // 2 + 1          # maxpool(3, s=2, p=1) output size
    Wp = (Wo - 1) // 2 + 1

    Hh = Ho + 3                      # rows per H-parity plane
    Hpad, Wpad = 2 * Hh, 2 * Wo + 6
    K2 = KW * Cin                    # per-row-tap contraction size
    K2P = _round_up(K2, 8)

    # ---- wrapper glue: NHWC bf16, pad, horizontal-only unroll + parity split
    x = jnp.transpose(x_nchw, (0, 2, 3, 1)).astype(jnp.bfloat16)
    x_pad = jnp.pad(x, ((0, 0), (pad, Hpad - pad - H),
                        (pad, Wpad - pad - W), (0, 0)))
    # B[n, i, ow, kw*Cin + c] = x_pad[n, i, 2*ow + kw, c]
    cols = [x_pad[:, :, kw:kw + 2 * Wo:2, :] for kw in range(KW)]
    b = jnp.concatenate(cols, axis=-1)                       # (N, Hpad, Wo, K2)
    # split padded rows by parity so every vertical tap is a contiguous slice
    b = jnp.transpose(b.reshape(N, Hh, 2, Wo, K2), (0, 2, 1, 3, 4))
    b = b.reshape(N, 2 * Hh, Wo, K2)
    b = jnp.pad(b, ((0, 0), (0, 0), (0, 0), (0, K2P - K2)))  # (N, 2*Hh, Wo, K2P)

    # fold BN scale into the bf16 weights; only the bias add stays in-kernel
    inv = gamma / jnp.sqrt(run_var + eps)
    wk = jnp.transpose(w_oihw, (2, 3, 1, 0)).reshape(KH, K2, Cout)
    wk = (wk * inv[None, None, :]).astype(jnp.bfloat16)
    wk = jnp.pad(wk, ((0, 0), (0, K2P - K2), (0, C_PAD - Cout)))
    bias = (beta - run_mean * inv).astype(jnp.float32)
    bias = jnp.pad(bias, (0, C_PAD - Cout)).reshape(1, C_PAD)

    kernel = _make_stem_kernel(KH, K2P, Ho, Wo, Hp, Wp, Hh)
    out = pl.pallas_call(
        kernel,
        out_shape=jax.ShapeDtypeStruct((N, Hp, Wp, C_PAD), jnp.float32),
        grid=(N,),
        in_specs=[
            pl.BlockSpec((1, 2 * Hh, Wo, K2P), lambda n: (n, 0, 0, 0)),
            pl.BlockSpec((KH, K2P, C_PAD), lambda n: (0, 0, 0)),
            pl.BlockSpec((1, C_PAD), lambda n: (0, 0)),
        ],
        out_specs=pl.BlockSpec((1, Hp, Wp, C_PAD), lambda n: (n, 0, 0, 0)),
        scratch_shapes=[
            pltpu.VMEM((Ho + 2, Wo + 2, C_PAD), jnp.float32),
            pltpu.VMEM((Ho + 2, Wp, C_PAD), jnp.float32),
        ],
        compiler_params=pltpu.CompilerParams(
            dimension_semantics=("parallel",)),
    )(b, wk, bias)

    out = out[:, :, :, :Cout]                                # drop channel pad
    return jnp.transpose(out, (0, 3, 1, 2))                  # back to NCHW


def senet_stem_ref(x_nchw, w, gamma, beta, mean, var, eps=1e-5):
    y = lax.conv_general_dilated(
        x_nchw, w, window_strides=(2, 2), padding=((3, 3), (3, 3)),
        dimension_numbers=("NCHW", "OIHW", "NCHW"))
    inv = (gamma / jnp.sqrt(var + eps)).reshape(1, -1, 1, 1)
    y = (y - mean.reshape(1, -1, 1, 1)) * inv + beta.reshape(1, -1, 1, 1)
    y = jnp.maximum(y, 0.0)
    y = lax.reduce_window(y, -jnp.inf, lax.max,
                          window_dimensions=(1, 1, 3, 3),
                          window_strides=(1, 1, 2, 2),
                          padding=((0, 0), (0, 0), (1, 1), (1, 1)))
    return y


if __name__ == "__main__":
    key = jax.random.PRNGKey(0)
    N, Cin, H, W = 2, 3, 16, 16
    Cout = 16
    k_x, k_w = jax.random.split(key)
    x = jax.random.normal(k_x, (N, Cin, H, W), dtype=jnp.float32)
    w = 0.1 * jax.random.normal(k_w, (Cout, Cin, 7, 7), dtype=jnp.float32)
    gamma = 1.0 + 0.1 * jnp.arange(Cout, dtype=jnp.float32)
    beta = 0.05 * jnp.arange(Cout, dtype=jnp.float32)
    run_mean = 0.01 * jnp.arange(Cout, dtype=jnp.float32)
    run_var = 1.0 + 0.02 * jnp.arange(Cout, dtype=jnp.float32)

    out = senet_stem_forward(x, w, gamma, beta, run_mean, run_var)
    out = jax.block_until_ready(out)

    ref = senet_stem_ref(x, w, gamma, beta, run_mean, run_var)
    assert out.shape == (N, Cout, 4, 4), out.shape
    # bf16 matmul operands (f32 accumulate) -> relaxed tolerance vs f32 ref.
    assert jnp.allclose(out, ref, rtol=2e-2, atol=2e-2), float(
        jnp.max(jnp.abs(out - ref)))
    print("KERNEL_OK")
</pallas_src>

<mosaic_0001>
module attributes {stable_mosaic.version = 11 : i64} {
  func.func @kernel(%arg0: i32, %arg1: memref<1x22x8x24xbf16, #tpu.memory_space<vmem>>, %arg2: memref<7x24x128xbf16, #tpu.memory_space<vmem>>, %arg3: memref<1x128xf32, #tpu.memory_space<vmem>>, %arg4: memref<1x4x4x128xf32, #tpu.memory_space<vmem>>, %arg5: memref<10x10x128xf32, #tpu.memory_space<vmem>>, %arg6: memref<10x4x128xf32, #tpu.memory_space<vmem>>) attributes {dimension_semantics = [#tpu.dimension_semantics<parallel>], iteration_bounds = array<i64: 2>, scalar_prefetch = 0 : i64, scratch_operands = 2 : i64, tpu.core_type = #tpu.core_type<tc>, window_params = [{transform_indices = @transform_0, window_bounds = array<i64: 1, 22, 8, 24>}, {pipeline_mode = #tpu.pipeline_mode<synchronous>, transform_indices = @transform_1, window_bounds = array<i64: 7, 24, 128>}, {pipeline_mode = #tpu.pipeline_mode<synchronous>, transform_indices = @transform_2, window_bounds = array<i64: 1, 128>}, {transform_indices = @transform_3, window_bounds = array<i64: 1, 4, 4, 128>}]} {
    %cst = arith.constant 0.000000e+00 : f32
    %0 = vector.broadcast %cst : f32 to vector<64x128xf32>
    %c0 = arith.constant 0 : index
    %c0_0 = arith.constant 0 : index
    %c0_1 = arith.constant 0 : index
    %c0_2 = arith.constant 0 : index
    %1 = vector.load %arg1[%c0, %c0_0, %c0_1, %c0_2] : memref<1x22x8x24xbf16, #tpu.memory_space<vmem>>, vector<1x8x8x24xbf16>
    %2 = vector.shape_cast %1 : vector<1x8x8x24xbf16> to vector<8x8x24xbf16>
    %3 = vector.shape_cast %2 : vector<8x8x24xbf16> to vector<64x24xbf16>
    %c0_3 = arith.constant 0 : index
    %c0_4 = arith.constant 0 : index
    %c0_5 = arith.constant 0 : index
    %4 = vector.load %arg2[%c0_3, %c0_4, %c0_5] : memref<7x24x128xbf16, #tpu.memory_space<vmem>>, vector<1x24x128xbf16>
    %5 = vector.shape_cast %4 : vector<1x24x128xbf16> to vector<24x128xbf16>
    %cst_6 = arith.constant dense<0.000000e+00> : vector<64x128xf32>
    %6 = tpu.matmul %3, %5, %cst_6 {dimension_numbers = #tpu.dot_dimension_numbers<[1], [0], [0], [1], [0, 0, 1, 1], [], []>} : vector<64x24xbf16>, vector<24x128xbf16>, vector<64x128xf32> -> vector<64x128xf32>
    %7 = arith.addf %0, %6 : vector<64x128xf32>
    %c0_7 = arith.constant 0 : index
    %c11 = arith.constant 11 : index
    %c0_8 = arith.constant 0 : index
    %c0_9 = arith.constant 0 : index
    %8 = vector.load %arg1[%c0_7, %c11, %c0_8, %c0_9] : memref<1x22x8x24xbf16, #tpu.memory_space<vmem>>, vector<1x8x8x24xbf16>
    %9 = vector.shape_cast %8 : vector<1x8x8x24xbf16> to vector<8x8x24xbf16>
    %10 = vector.shape_cast %9 : vector<8x8x24xbf16> to vector<64x24xbf16>
    %c1 = arith.constant 1 : index
    %c0_10 = arith.constant 0 : index
    %c0_11 = arith.constant 0 : index
    %11 = vector.load %arg2[%c1, %c0_10, %c0_11] : memref<7x24x128xbf16, #tpu.memory_space<vmem>>, vector<1x24x128xbf16>
    %12 = vector.shape_cast %11 : vector<1x24x128xbf16> to vector<24x128xbf16>
    %cst_12 = arith.constant dense<0.000000e+00> : vector<64x128xf32>
    %13 = tpu.matmul %10, %12, %cst_12 {dimension_numbers = #tpu.dot_dimension_numbers<[1], [0], [0], [1], [0, 0, 1, 1], [], []>} : vector<64x24xbf16>, vector<24x128xbf16>, vector<64x128xf32> -> vector<64x128xf32>
    %14 = arith.addf %7, %13 : vector<64x128xf32>
    %c0_13 = arith.constant 0 : index
    %c1_14 = arith.constant 1 : index
    %c0_15 = arith.constant 0 : index
    %c0_16 = arith.constant 0 : index
    %15 = vector.load %arg1[%c0_13, %c1_14, %c0_15, %c0_16] : memref<1x22x8x24xbf16, #tpu.memory_space<vmem>>, vector<1x8x8x24xbf16>
    %16 = vector.shape_cast %15 : vector<1x8x8x24xbf16> to vector<8x8x24xbf16>
    %17 = vector.shape_cast %16 : vector<8x8x24xbf16> to vector<64x24xbf16>
    %c2 = arith.constant 2 : index
    %c0_17 = arith.constant 0 : index
    %c0_18 = arith.constant 0 : index
    %18 = vector.load %arg2[%c2, %c0_17, %c0_18] : memref<7x24x128xbf16, #tpu.memory_space<vmem>>, vector<1x24x128xbf16>
    %19 = vector.shape_cast %18 : vector<1x24x128xbf16> to vector<24x128xbf16>
    %cst_19 = arith.constant dense<0.000000e+00> : vector<64x128xf32>
    %20 = tpu.matmul %17, %19, %cst_19 {dimension_numbers = #tpu.dot_dimension_numbers<[1], [0], [0], [1], [0, 0, 1, 1], [], []>} : vector<64x24xbf16>, vector<24x128xbf16>, vector<64x128xf32> -> vector<64x128xf32>
    %21 = arith.addf %14, %20 : vector<64x128xf32>
    %c0_20 = arith.constant 0 : index
    %c12 = arith.constant 12 : index
    %c0_21 = arith.constant 0 : index
    %c0_22 = arith.constant 0 : index
    %22 = vector.load %arg1[%c0_20, %c12, %c0_21, %c0_22] : memref<1x22x8x24xbf16, #tpu.memory_space<vmem>>, vector<1x8x8x24xbf16>
    %23 = vector.shape_cast %22 : vector<1x8x8x24xbf16> to vector<8x8x24xbf16>
    %24 = vector.shape_cast %23 : vector<8x8x24xbf16> to vector<64x24xbf16>
    %c3 = arith.constant 3 : index
    %c0_23 = arith.constant 0 : index
    %c0_24 = arith.constant 0 : index
    %25 = vector.load %arg2[%c3, %c0_23, %c0_24] : memref<7x24x128xbf16, #tpu.memory_space<vmem>>, vector<1x24x128xbf16>
    %26 = vector.shape_cast %25 : vector<1x24x128xbf16> to vector<24x128xbf16>
    %cst_25 = arith.constant dense<0.000000e+00> : vector<64x128xf32>
    %27 = tpu.matmul %24, %26, %cst_25 {dimension_numbers = #tpu.dot_dimension_numbers<[1], [0], [0], [1], [0, 0, 1, 1], [], []>} : vector<64x24xbf16>, vector<24x128xbf16>, vector<64x128xf32> -> vector<64x128xf32>
    %28 = arith.addf %21, %27 : vector<64x128xf32>
    %c0_26 = arith.constant 0 : index
    %c2_27 = arith.constant 2 : index
    %c0_28 = arith.constant 0 : index
    %c0_29 = arith.constant 0 : index
    %29 = vector.load %arg1[%c0_26, %c2_27, %c0_28, %c0_29] : memref<1x22x8x24xbf16, #tpu.memory_space<vmem>>, vector<1x8x8x24xbf16>
    %30 = vector.shape_cast %29 : vector<1x8x8x24xbf16> to vector<8x8x24xbf16>
    %31 = vector.shape_cast %30 : vector<8x8x24xbf16> to vector<64x24xbf16>
    %c4 = arith.constant 4 : index
    %c0_30 = arith.constant 0 : index
    %c0_31 = arith.constant 0 : index
    %32 = vector.load %arg2[%c4, %c0_30, %c0_31] : memref<7x24x128xbf16, #tpu.memory_space<vmem>>, vector<1x24x128xbf16>
    %33 = vector.shape_cast %32 : vector<1x24x128xbf16> to vector<24x128xbf16>
    %cst_32 = arith.constant dense<0.000000e+00> : vector<64x128xf32>
    %34 = tpu.matmul %31, %33, %cst_32 {dimension_numbers = #tpu.dot_dimension_numbers<[1], [0], [0], [1], [0, 0, 1, 1], [], []>} : vector<64x24xbf16>, vector<24x128xbf16>, vector<64x128xf32> -> vector<64x128xf32>
    %35 = arith.addf %28, %34 : vector<64x128xf32>
    %c0_33 = arith.constant 0 : index
    %c13 = arith.constant 13 : index
    %c0_34 = arith.constant 0 : index
    %c0_35 = arith.constant 0 : index
    %36 = vector.load %arg1[%c0_33, %c13, %c0_34, %c0_35] : memref<1x22x8x24xbf16, #tpu.memory_space<vmem>>, vector<1x8x8x24xbf16>
    %37 = vector.shape_cast %36 : vector<1x8x8x24xbf16> to vector<8x8x24xbf16>
    %38 = vector.shape_cast %37 : vector<8x8x24xbf16> to vector<64x24xbf16>
    %c5 = arith.constant 5 : index
    %c0_36 = arith.constant 0 : index
    %c0_37 = arith.constant 0 : index
    %39 = vector.load %arg2[%c5, %c0_36, %c0_37] : memref<7x24x128xbf16, #tpu.memory_space<vmem>>, vector<1x24x128xbf16>
    %40 = vector.shape_cast %39 : vector<1x24x128xbf16> to vector<24x128xbf16>
    %cst_38 = arith.constant dense<0.000000e+00> : vector<64x128xf32>
    %41 = tpu.matmul %38, %40, %cst_38 {dimension_numbers = #tpu.dot_dimension_numbers<[1], [0], [0], [1], [0, 0, 1, 1], [], []>} : vector<64x24xbf16>, vector<24x128xbf16>, vector<64x128xf32> -> vector<64x128xf32>
    %42 = arith.addf %35, %41 : vector<64x128xf32>
    %c0_39 = arith.constant 0 : index
    %c3_40 = arith.constant 3 : index
    %c0_41 = arith.constant 0 : index
    %c0_42 = arith.constant 0 : index
    %43 = vector.load %arg1[%c0_39, %c3_40, %c0_41, %c0_42] : memref<1x22x8x24xbf16, #tpu.memory_space<vmem>>, vector<1x8x8x24xbf16>
    %44 = vector.shape_cast %43 : vector<1x8x8x24xbf16> to vector<8x8x24xbf16>
    %45 = vector.shape_cast %44 : vector<8x8x24xbf16> to vector<64x24xbf16>
    %c6 = arith.constant 6 : index
    %c0_43 = arith.constant 0 : index
    %c0_44 = arith.constant 0 : index
    %46 = vector.load %arg2[%c6, %c0_43, %c0_44] : memref<7x24x128xbf16, #tpu.memory_space<vmem>>, vector<1x24x128xbf16>
    %47 = vector.shape_cast %46 : vector<1x24x128xbf16> to vector<24x128xbf16>
    %cst_45 = arith.constant dense<0.000000e+00> : vector<64x128xf32>
    %48 = tpu.matmul %45, %47, %cst_45 {dimension_numbers = #tpu.dot_dimension_numbers<[1], [0], [0], [1], [0, 0, 1, 1], [], []>} : vector<64x24xbf16>, vector<24x128xbf16>, vector<64x128xf32> -> vector<64x128xf32>
    %49 = arith.addf %42, %48 : vector<64x128xf32>
    %c0_46 = arith.constant 0 : index
    %c0_47 = arith.constant 0 : index
    %50 = vector.load %arg3[%c0_46, %c0_47] : memref<1x128xf32, #tpu.memory_space<vmem>>, vector<1x128xf32>
    %51 = vector.broadcast %50 : vector<1x128xf32> to vector<64x128xf32>
    %52 = arith.addf %49, %51 : vector<64x128xf32>
    %cst_48 = arith.constant 0.000000e+00 : f32
    %53 = vector.broadcast %cst_48 : f32 to vector<64x128xf32>
    %54 = arith.maximumf %52, %53 : vector<64x128xf32>
    %cst_49 = arith.constant 0.000000e+00 : f32
    %55 = vector.broadcast %cst_49 : f32 to vector<10x10x128xf32>
    %c0_50 = arith.constant 0 : index
    %c0_51 = arith.constant 0 : index
    %c0_52 = arith.constant 0 : index
    %56 = vector.load %arg5[%c0_50, %c0_51, %c0_52] : memref<10x10x128xf32, #tpu.memory_space<vmem>>, vector<10x10x128xf32>
    tpu.vector_store %arg5[%c0_50, %c0_51, %c0_52], %55 {strides = array<i32>} : memref<10x10x128xf32, #tpu.memory_space<vmem>>, vector<10x10x128xf32>,
    %57 = vector.shape_cast %54 : vector<64x128xf32> to vector<8x8x128xf32>
    %c1_53 = arith.constant 1 : index
    %c1_54 = arith.constant 1 : index
    %c0_55 = arith.constant 0 : index
    %58 = vector.load %arg5[%c1_53, %c1_54, %c0_55] : memref<10x10x128xf32, #tpu.memory_space<vmem>>, vector<8x8x128xf32>
    tpu.vector_store %arg5[%c1_53, %c1_54, %c0_55], %57 {strides = array<i32>} : memref<10x10x128xf32, #tpu.memory_space<vmem>>, vector<8x8x128xf32>,
    %c0_56 = arith.constant 0 : index
    %c0_57 = arith.constant 0 : index
    %c0_58 = arith.constant 0 : index
    %59 = tpu.strided_load %arg5[%c0_56, %c0_57, %c0_58] {strides = array<i32: 1, 2, 1>} : memref<10x10x128xf32, #tpu.memory_space<vmem>>, vector<10x4x128xf32>
    %c0_59 = arith.constant 0 : index
    %c1_60 = arith.constant 1 : index
    %c0_61 = arith.constant 0 : index
    %60 = tpu.strided_load %arg5[%c0_59, %c1_60, %c0_61] {strides = array<i32: 1, 2, 1>} : memref<10x10x128xf32, #tpu.memory_space<vmem>>, vector<10x4x128xf32>
    %61 = arith.maximumf %59, %60 : vector<10x4x128xf32>
    %c0_62 = arith.constant 0 : index
    %c2_63 = arith.constant 2 : index
    %c0_64 = arith.constant 0 : index
    %62 = tpu.strided_load %arg5[%c0_62, %c2_63, %c0_64] {strides = array<i32: 1, 2, 1>} : memref<10x10x128xf32, #tpu.memory_space<vmem>>, vector<10x4x128xf32>
    %63 = arith.maximumf %61, %62 : vector<10x4x128xf32>
    %c0_65 = arith.constant 0 : index
    %c0_66 = arith.constant 0 : index
    %c0_67 = arith.constant 0 : index
    %64 = vector.load %arg6[%c0_65, %c0_66, %c0_67] : memref<10x4x128xf32, #tpu.memory_space<vmem>>, vector<10x4x128xf32>
    tpu.vector_store %arg6[%c0_65, %c0_66, %c0_67], %63 {strides = array<i32>} : memref<10x4x128xf32, #tpu.memory_space<vmem>>, vector<10x4x128xf32>,
    %c0_68 = arith.constant 0 : index
    %c0_69 = arith.constant 0 : index
    %c0_70 = arith.constant 0 : index
    %65 = tpu.strided_load %arg6[%c0_68, %c0_69, %c0_70] {strides = array<i32: 2, 1, 1>} : memref<10x4x128xf32, #tpu.memory_space<vmem>>, vector<4x4x128xf32>
    %c1_71 = arith.constant 1 : index
    %c0_72 = arith.constant 0 : index
    %c0_73 = arith.constant 0 : index
    %66 = tpu.strided_load %arg6[%c1_71, %c0_72, %c0_73] {strides = array<i32: 2, 1, 1>} : memref<10x4x128xf32, #tpu.memory_space<vmem>>, vector<4x4x128xf32>
    %67 = arith.maximumf %65, %66 : vector<4x4x128xf32>
    %c2_74 = arith.constant 2 : index
    %c0_75 = arith.constant 0 : index
    %c0_76 = arith.constant 0 : index
    %68 = tpu.strided_load %arg6[%c2_74, %c0_75, %c0_76] {strides = array<i32: 2, 1, 1>} : memref<10x4x128xf32, #tpu.memory_space<vmem>>, vector<4x4x128xf32>
    %69 = arith.maximumf %67, %68 : vector<4x4x128xf32>
    %c0_77 = arith.constant 0 : index
    %c0_78 = arith.constant 0 : index
    %c0_79 = arith.constant 0 : index
    %c0_80 = arith.constant 0 : index
    %70 = vector.load %arg4[%c0_77, %c0_78, %c0_79, %c0_80] : memref<1x4x4x128xf32, #tpu.memory_space<vmem>>, vector<1x4x4x128xf32>
    %71 = vector.shape_cast %70 : vector<1x4x4x128xf32> to vector<4x4x128xf32>
    %72 = vector.shape_cast %69 : vector<4x4x128xf32> to vector<1x4x4x128xf32>
    tpu.vector_store %arg4[%c0_77, %c0_78, %c0_79, %c0_80], %72 {strides = array<i32>} : memref<1x4x4x128xf32, #tpu.memory_space<vmem>>, vector<1x4x4x128xf32>,
    return
  }
  func.func @transform_0(%arg0: i32) -> (i32, i32, i32, i32) {
    %c0_i32 = arith.constant 0 : i32
    %c0_i32_0 = arith.constant 0 : i32
    %c0_i32_1 = arith.constant 0 : i32
    %c0_i32_2 = arith.constant 0 : i32
    return %arg0, %c0_i32, %c0_i32_0, %c0_i32_1 : i32, i32, i32, i32
  }
  func.func @transform_1(%arg0: i32) -> (i32, i32, i32) {
    %c0_i32 = arith.constant 0 : i32
    %c0_i32_0 = arith.constant 0 : i32
    %c0_i32_1 = arith.constant 0 : i32
    %c0_i32_2 = arith.constant 0 : i32
    return %c0_i32, %c0_i32_0, %c0_i32_1 : i32, i32, i32
  }
  func.func @transform_2(%arg0: i32) -> (i32, i32) {
    %c0_i32 = arith.constant 0 : i32
    %c0_i32_0 = arith.constant 0 : i32
    %c0_i32_1 = arith.constant 0 : i32
    return %c0_i32, %c0_i32_0 : i32, i32
  }
  func.func @transform_3(%arg0: i32) -> (i32, i32, i32, i32) {
    %c0_i32 = arith.constant 0 : i32
    %c0_i32_0 = arith.constant 0 : i32
    %c0_i32_1 = arith.constant 0 : i32
    %c0_i32_2 = arith.constant 0 : i32
    return %arg0, %c0_i32, %c0_i32_0, %c0_i32_1 : i32, i32, i32, i32
  }
}

</mosaic_0001>

<llo_original>
// kernel: tpu_custom_call.1
$region0: #{tpu_custom_call.1}
  #allocation0 [shape = 'u32[]', space=smem, size = 0x4, offset = 0x4, fixed_abs, tag = 'smem constant byte address 0x4 - core index']
  #allocation1 [shape = 'u32[144,128]{1,0:T(1,128)}', space=vmem, size = 0x12000, scoped, tag = 'internal scratch']
  #allocation2 [shape = 'f32[10,10,128]{2,1,0:T(8,128)}', space=vmem, size = 0x14000, scoped, tag = 'scratch operand']
  #allocation3 [shape = 'f32[10,4,128]{2,1,0:T(4,128)}', space=vmem, size = 0x5000, scoped, tag = 'scratch operand']
  %s0 = inlined_call_operand.hbm [shape: bf16[2,22,8,24], index: 0, kind: input, shape index: {}]
  %s1 = inlined_call_operand.hbm [shape: bf16[7,24,128], index: 1, kind: input, shape index: {}]
  %s2 = inlined_call_operand.vmem [shape: f32[1,128], index: 2, kind: input, shape index: {}]
  %s3 = inlined_call_operand.hbm [shape: f32[2,4,4,128], index: 3, kind: output, shape index: {}]
  %s4 = sld [smem:[#allocation0]]
  $region53: #{tpu_custom_call.1} parent=0
    _
  %s6 = ssub.s32 1, %s4
  %s7 = scalar_select 0, %s6, %s4
  $region1: #{tpu_custom_call.1} parent=0
    #allocation4 [shape = 'u8[90112]{0}', space=vmem, size = 0x16000, scoped, tag = 'input window, operand 0']
    #allocation5 [shape = 's32[2]{0}', space=sflag, size = 0x8, scoped, tag = 'scoped memory for tpu_custom_call.1']
    #allocation6 [shape = 's32[2]{0}', space=sflag, size = 0x8, scoped, tag = 'scoped memory for tpu_custom_call.1']
    #allocation7 [shape = 'u8[43008]{0}', space=vmem, size = 0xa800, scoped, tag = 'input window, operand 1, single buffered']
    #allocation8 [shape = 's32[1]{0}', space=sflag, size = 0x4, scoped, tag = 'scoped memory for tpu_custom_call.1']
    #allocation9 [shape = 'u8[16384]{0}', space=vmem, size = 0x4000, scoped, tag = 'output window, operand 0']
    %8 = vsyncpa [#allocation5], 0
    %s9 = scalar_lea.sflag [#allocation5], 1
    %10 = vsyncpa %s9, 0
    %11 = vsyncpa [#allocation8], 0
    %12 = vsyncpa [#allocation6], 0
    %s13 = scalar_lea.sflag [#allocation6], 1
    %14 = vsyncpa %s13, 0
    loop: start=0, step=1, limit=4
    $region2: #{tpu_custom_call.1} parent=1 // loop_pre_header
      _
    $region3: #{tpu_custom_call.1} parent=1 // loop_header
      %s16 = sphi 0, %s20
      %p17 = scmp.ge.s32.totalorder %s16, 4
      %s26 = sphi 0, %s28
      %s29 = sphi 0, %s26
      %s30 = sphi 0, %s29
      %s46 = sphi 0, %s30
      %s50 = sphi 0, %s50
      %s52 = sphi 0, %s50
      %s53 = sphi 0, %s52
      %s67 = sphi 0, %s53
      %s71 = sphi 0, %s71
      %s73 = sphi 0, %s71
      %s74 = sphi 0, %s73
      %s88 = sphi 0, %s74
      %s94 = sphi 0, %s96
      %s97 = sphi 0, %s94
      %s98 = sphi 0, %s97
      %s114 = sphi 0, %s98
    $region4: #{tpu_custom_call.1} parent=1 // loop_header_branch
      %19 = sbr.rel (%p17) target = $region8
    $region5: #{tpu_custom_call.1} parent=1 // loop_body
      %s21 = ssub.s32 %s16, 1
      %s22 = ssub.s32 %s16, 2
      %s23 = sadd.s32 %s16, 1
      %s24 = ssub.s32 %s16, %s23
      %p25 = scmp.eq.s32.totalorder %s24, 0
      %s27 = sadd.s32 %s26, 1
      %s28 = scalar_select %p25, %s26, %s27
      %p31 = pneg %p25
      %p32 = scmp.eq.s32.totalorder %s16, 1
      %p33 = por %p31, %p32
      %p34 = scmp.ne.s32.totalorder %s26, %s29
      %p35 = scmp.eq.s32.totalorder %s16, 0
      %p36 = por %p34, %p35
      %p37 = scmp.ne.s32.totalorder %s26, %s29
      %p38 = scmp.eq.s32.totalorder %s21, 1
      %p39 = por %p37, %p38
      %p40 = scmp.ne.s32.totalorder %s29, %s30
      %p41 = scmp.eq.s32.totalorder %s21, 0
      %p42 = por %p40, %p41
      %p43 = scmp.ne.s32.totalorder %s29, %s30
      %p44 = scmp.eq.s32.totalorder %s22, 1
      %p45 = por %p43, %p44
      %p47 = scmp.ne.s32.totalorder %s30, %s46
      %p48 = scmp.eq.s32.totalorder %s22, 0
      %p49 = por %p47, %p48
      %s51 = sadd.s32 %s50, 1
      %p54 = scmp.eq.s32.totalorder %s16, 1
      %p55 = scmp.ne.s32.totalorder %s50, %s52
      %p56 = scmp.eq.s32.totalorder %s16, 0
      %p57 = por %p55, %p56
      %p58 = scmp.ne.s32.totalorder %s50, %s52
      %p59 = scmp.eq.s32.totalorder %s21, 1
      %p60 = por %p58, %p59
      %p61 = scmp.ne.s32.totalorder %s52, %s53
      %p62 = scmp.eq.s32.totalorder %s21, 0
      %p63 = por %p61, %p62
      %p64 = scmp.ne.s32.totalorder %s52, %s53
      %p65 = scmp.eq.s32.totalorder %s22, 1
      %p66 = por %p64, %p65
      %p68 = scmp.ne.s32.totalorder %s53, %s67
      %p69 = scmp.eq.s32.totalorder %s22, 0
      %p70 = por %p68, %p69
      %s72 = sadd.s32 %s71, 1
      %p75 = scmp.eq.s32.totalorder %s16, 1
      %p76 = scmp.ne.s32.totalorder %s71, %s73
      %p77 = scmp.eq.s32.totalorder %s16, 0
      %p78 = por %p76, %p77
      %p79 = scmp.ne.s32.totalorder %s71, %s73
      %p80 = scmp.eq.s32.totalorder %s21, 1
      %p81 = por %p79, %p80
      %p82 = scmp.ne.s32.totalorder %s73, %s74
      %p83 = scmp.eq.s32.totalorder %s21, 0
      %p84 = por %p82, %p83
      %p85 = scmp.ne.s32.totalorder %s73, %s74
      %p86 = scmp.eq.s32.totalorder %s22, 1
      %p87 = por %p85, %p86
      %p89 = scmp.ne.s32.totalorder %s74, %s88
      %p90 = scmp.eq.s32.totalorder %s22, 0
      %p91 = por %p89, %p90
      %s92 = ssub.s32 %s16, %s23
      %p93 = scmp.eq.s32.totalorder %s92, 0
      %s95 = sadd.s32 %s94, 1
      %s96 = scalar_select %p93, %s94, %s95
      %p99 = pneg %p93
      %p100 = scmp.eq.s32.totalorder %s16, 1
      %p101 = por %p99, %p100
      %p102 = scmp.ne.s32.totalorder %s94, %s97
      %p103 = scmp.eq.s32.totalorder %s16, 0
      %p104 = por %p102, %p103
      %p105 = scmp.ne.s32.totalorder %s94, %s97
      %p106 = scmp.eq.s32.totalorder %s21, 1
      %p107 = por %p105, %p106
      %p108 = scmp.ne.s32.totalorder %s97, %s98
      %p109 = scmp.eq.s32.totalorder %s21, 0
      %p110 = por %p108, %p109
      %p111 = scmp.ne.s32.totalorder %s97, %s98
      %p112 = scmp.eq.s32.totalorder %s22, 1
      %p113 = por %p111, %p112
      %p115 = scmp.ne.s32.totalorder %s98, %s114
      %p116 = scmp.eq.s32.totalorder %s22, 0
      %p117 = por %p115, %p116
      %p118 = scmp.le.s32.totalorder 1, %s16
      %p119 = scmp.lt.s32.totalorder %s16, 3
      %p120 = pnand %p118, %p119
      %p121 = pneg %p120
      // Predicated region
      $region9: #{tpu_custom_call.1} parent=5 // pred_check
        _
      $region10: #{tpu_custom_call.1} parent=5 // pred_check_branch
        %123 = sbr.rel (%p120) target = $region12
      $region11: #{tpu_custom_call.1} parent=5 // pred_region
        %s124 = ssub.s32 %s16, 1
        // Predicated region
        $region13: #{tpu_custom_call.1} parent=11 // pred_check
          %p125 = pneg %p63
        $region14: #{tpu_custom_call.1} parent=11 // pred_check_branch
          %127 = sbr.rel (%p125) target = $region16
        $region15: #{tpu_custom_call.1} parent=11 // pred_region
          %s129 = ssub.s32 1344, 1344
          %130 = vsyncadd [#allocation8], %s129
          %s131 = sshll.u32 [#allocation7], 4
          %s132 = int_to_ptr.vmem [resolvable:$true] %s131
          %137 = dma.hbm_to_vmem [thread:$0]  %s1, 1344, %s132, [#allocation8], 64, 64, 4
        $region16: #{tpu_custom_call.1} parent=11 // pred_fallthru
          _
        // Predicated region
        $region17: #{tpu_custom_call.1} parent=11 // pred_check
          %p138 = pneg %p84
        $region18: #{tpu_custom_call.1} parent=11 // pred_check_branch
          %140 = sbr.rel (%p138) target = $region20
        $region19: #{tpu_custom_call.1} parent=11 // pred_region
          _
        $region20: #{tpu_custom_call.1} parent=11 // pred_fallthru
          _
      $region12: #{tpu_custom_call.1} parent=5 // pred_fallthru
        _
      %p141 = scmp.lt.s32.totalorder %s16, 2
      // Predicated region
      $region21: #{tpu_custom_call.1} parent=5 // pred_check
        %p142 = pneg %p141
      $region22: #{tpu_custom_call.1} parent=5 // pred_check_branch
        %144 = sbr.rel (%p142) target = $region24
      $region23: #{tpu_custom_call.1} parent=5 // pred_region
        // Predicated region
        $region25: #{tpu_custom_call.1} parent=23 // pred_check
          %p145 = pneg %p36
        $region26: #{tpu_custom_call.1} parent=23 // pred_check_branch
          %147 = sbr.rel (%p145) target = $region28
        $region27: #{tpu_custom_call.1} parent=23 // pred_region
          %s148 = sand.u32 %s26, 1
          %s149 = scalar_lea.sflag [#allocation5], %s148
          %s150 = sand.u32 %s26, 1
          %s151 = smul.addr %s150, 88
          %s152 = scalar_lea.vmem [#allocation4], %s151
          %s154 = ssub.s32 1408, 1408
          %155 = vsyncadd %s149, %s154
          %s156 = smul.addr %s16, 22
          %s157 = smul.addr %s156, 64
          %s158 = scalar_lea.hbm %s0, %s157
          %s159 = sshll.u32 %s152, 4
          %s160 = int_to_ptr.vmem [resolvable:$true] %s159
          %165 = dma.hbm_to_vmem [thread:$0]  %s158, 1408, %s160, %s149, 64, 64, 4
        $region28: #{tpu_custom_call.1} parent=23 // pred_fallthru
          _
      $region24: #{tpu_custom_call.1} parent=5 // pred_fallthru
        _
      %p166 = scmp.le.s32.totalorder 1, %s16
      %p167 = scmp.lt.s32.totalorder %s16, 3
      %p168 = pnand %p166, %p167
      %p169 = pneg %p168
      // Predicated region
      $region29: #{tpu_custom_call.1} parent=5 // pred_check
        _
      $region30: #{tpu_custom_call.1} parent=5 // pred_check_branch
        %171 = sbr.rel (%p168) target = $region32
      $region31: #{tpu_custom_call.1} parent=5 // pred_region
        %s172 = ssub.s32 %s16, 1
        %s173 = sand.u32 %s29, 1
        %s174 = scalar_lea.sflag [#allocation5], %s173
        %s175 = sand.u32 %s29, 1
        %s176 = smul.addr %s175, 88
        %s177 = scalar_lea.vmem [#allocation4], %s176
        // Predicated region
        $region33: #{tpu_custom_call.1} parent=31 // pred_check
          %p178 = pneg %p42
        $region34: #{tpu_custom_call.1} parent=31 // pred_check_branch
          %180 = sbr.rel (%p178) target = $region36
        $region35: #{tpu_custom_call.1} parent=31 // pred_region
          %181 = dma.done %s174, 1408
        $region36: #{tpu_custom_call.1} parent=31 // pred_fallthru
          _
        // Predicated region
        $region37: #{tpu_custom_call.1} parent=31 // pred_check
          %p182 = pneg %p63
        $region38: #{tpu_custom_call.1} parent=31 // pred_check_branch
          %184 = sbr.rel (%p182) target = $region40
        $region39: #{tpu_custom_call.1} parent=31 // pred_region
          %185 = dma.done [#allocation8], 1344
        $region40: #{tpu_custom_call.1} parent=31 // pred_fallthru
          _
        %s186 = sand.u32 %s29, 1
        %s187 = scalar_lea.sflag [#allocation5], %s186
        %s188 = sand.u32 %s29, 1
        %s189 = smul.addr %s188, 88
        %s190 = scalar_lea.vmem [#allocation4], %s189
        %p191 = pneg %p42
        %p192 = pneg %p39
        %p193 = pneg %p63
        %p194 = pneg %p60
        %p195 = pneg %p84
        %p196 = pneg %p81
        %p197 = pneg %p110
        %p198 = pneg %p107
        %s199 = sand.u32 %s97, 1
        %s200 = scalar_lea.sflag [#allocation6], %s199
        %s201 = sand.u32 %s97, 1
        %s202 = smul.addr %s201, 16
        %s203 = scalar_lea.vmem [#allocation9], %s202
        %v205 = vld [vmem:[%s177] sm:$0xf]
        %v206 = vld [vmem:[%s177 + $0x4] sm:$0xf]
        %v207 = vld [vmem:[%s177 + $0x8] sm:$0xf]
        %v208 = vld [vmem:[%s177 + $0xc] sm:$0xf]
        %v209 = vld [vmem:[%s177 + $0x10] sm:$0xf]
        %v210 = vld [vmem:[%s177 + $0x14] sm:$0xf]
        %v211 = vld [vmem:[%s177 + $0x18] sm:$0xf]
        %v212 = vld [vmem:[%s177 + $0x1c] sm:$0xf]
        %v213 = vld [vmem:[#allocation7] sm:$0xf]
        %v214 = vld [vmem:[#allocation7 + $0x4] sm:$0xf]
        %v215 = vld [vmem:[#allocation7 + $0x8] sm:$0xf]
        %s216 = scalar_lea.vmem %s177, 44 [#allocation4]
        %v217 = vld [vmem:[%s216] sm:$0xf]
        %v218 = vld [vmem:[%s216 + $0x4] sm:$0xf]
        %v219 = vld [vmem:[%s216 + $0x8] sm:$0xf]
        %v220 = vld [vmem:[%s216 + $0xc] sm:$0xf]
        %v221 = vld [vmem:[%s216 + $0x10] sm:$0xf]
        %v222 = vld [vmem:[%s216 + $0x14] sm:$0xf]
        %v223 = vld [vmem:[%s216 + $0x18] sm:$0xf]
        %v224 = vld [vmem:[%s216 + $0x1c] sm:$0xf]
        %s225 = scalar_lea.vmem [#allocation7], 12
        %v226 = vld [vmem:[%s225] sm:$0xf]
        %v227 = vld [vmem:[%s225 + $0x4] sm:$0xf]
        %v228 = vld [vmem:[%s225 + $0x8] sm:$0xf]
        %v237 = vunpack.c.l.b16 %v217
        %v238 = vunpack.c.l.b16 %v218
        %v239 = vunpack.c.l.b16 %v219
        %v240 = vunpack.c.l.b16 %v220
        %v241 = vunpack.c.l.b16 %v221
        %v242 = vunpack.c.l.b16 %v222
        %v243 = vunpack.c.l.b16 %v223
        %v244 = vunpack.c.l.b16 %v224
        %v245 = vpack.c.b16 %v238, %v237
        %v246 = vpack.c.b16 %v240, %v239
        %v247 = vpack.c.b16 %v242, %v241
        %v248 = vpack.c.b16 %v244, %v243
        %v252 = vunpack.c.l.b16 %v226
        %v253 = vunpack.c.l.b16 %v227
        %v254 = vunpack.c.l.b16 %v228
        %v255 = vpack.c.b16 %v253, %v252
        %v256 = vpack.c.b16 %v254, %v254
        %vm258 = vcmask 195584
        %v260 = vsel %vm258, %v245, 0
        %v263 = vsel %vm258, %v246, 0
        %v266 = vsel %vm258, %v247, 0
        %v269 = vsel %vm258, %v248, 0
        %vm271 = vcmask 1043456
        %v273 = vsel %vm271, %v256, 0
        %275 = vmatprep.subr.bf16.mxu0 0
        %276 = vmatpush1.bf16.msra.mxu0 %v255
        %277 = vmatprep.subr.bf16.mxu0 0
        %278 = vmatpush1.bf16.msra.mxu0 %v273
        %279 = vmatprep.subr.bf16.mxu0 0
        %280 = vmatpush1.bf16.msra.mxu0 0
        %281 = vmatprep.subr.bf16.mxu0 0
        %282 = vmatpush1.bf16.msra.mxu0 0
        %283 = vmatprep.subr.bf16.mxu0 0
        %284 = vmatpush1.bf16.msra.mxu0 0
        %285 = vmatprep.subr.bf16.mxu0 0
        %286 = vmatpush1.bf16.msra.mxu0 0
        %287 = vmatprep.subr.bf16.mxu0 0
        %288 = vmatpush1.bf16.msra.mxu0 0
        %289 = vmatprep.subr.bf16.mxu0 0
        %290 = vmatpush1.bf16.msra.mxu0 0
        %291 = vmatprep.subr.bf16.mxu0 0
        %292 = vmatpush1.bf16.msra.mxu0 0
        %293 = vmatprep.subr.bf16.mxu0 0
        %294 = vmatpush1.bf16.msra.mxu0 0
        %295 = vmatprep.subr.bf16.mxu0 0
        %296 = vmatpush1.bf16.msra.mxu0 0
        %297 = vmatprep.subr.bf16.mxu0 0
        %298 = vmatpush1.bf16.msra.mxu0 0
        %299 = vmatprep.subr.bf16.mxu0 0
        %300 = vmatpush1.bf16.msra.mxu0 0
        %301 = vmatprep.subr.bf16.mxu0 0
        %302 = vmatpush1.bf16.msra.mxu0 0
        %303 = vmatprep.subr.bf16.mxu0 0
        %304 = vmatpush1.bf16.msra.mxu0 0
        %305 = vmatprep.subr.bf16.mxu0 0
        %306 = vmatpush1.bf16.msra.mxu0 0
        %307 = vmatprep.mubr.bf16.mxu0 0
        %308 = vmatmul.mubr.bf16.gmra.mrb[0].mxu0 %v260
        %v309 = vpop.f32.mrb[0].mxu0
        %v310 = vadd.f32 0.0, %v309
        %v311 = vpop.f32.mrb[0].mxu0
        %v312 = vpop.f32.mrb[0].mxu0
        %v313 = vadd.f32 0.0, %v312
        %v314 = vpop.f32.mrb[0].mxu0
        %315 = vmatprep.mubr.bf16.mxu0 0
        %316 = vmatmul.mubr.bf16.gmra.mrb[0].mxu0 %v263
        %v317 = vpop.f32.mrb[0].mxu0
        %v318 = vadd.f32 0.0, %v317
        %v319 = vpop.f32.mrb[0].mxu0
        %v320 = vpop.f32.mrb[0].mxu0
        %v321 = vadd.f32 0.0, %v320
        %v322 = vpop.f32.mrb[0].mxu0
        %323 = vmatprep.mubr.bf16.mxu0 0
        %324 = vmatmul.mubr.bf16.gmra.mrb[0].mxu0 %v266
        %v325 = vpop.f32.mrb[0].mxu0
        %v326 = vadd.f32 0.0, %v325
        %v327 = vpop.f32.mrb[0].mxu0
        %v328 = vpop.f32.mrb[0].mxu0
        %v329 = vadd.f32 0.0, %v328
        %v330 = vpop.f32.mrb[0].mxu0
        %331 = vmatprep.mubr.bf16.mxu0 0
        %332 = vmatmul.mubr.bf16.gmra.mrb[0].mxu0 %v269
        %v333 = vpop.f32.mrb[0].mxu0
        %v334 = vadd.f32 0.0, %v333
        %v335 = vpop.f32.mrb[0].mxu0
        %v336 = vpop.f32.mrb[0].mxu0
        %v337 = vadd.f32 0.0, %v336
        %v338 = vpop.f32.mrb[0].mxu0
        %339 = vdwg.mxu0
        %v348 = vunpack.c.l.b16 %v205
        %v349 = vunpack.c.l.b16 %v206
        %v350 = vunpack.c.l.b16 %v207
        %v351 = vunpack.c.l.b16 %v208
        %v352 = vunpack.c.l.b16 %v209
        %v353 = vunpack.c.l.b16 %v210
        %v354 = vunpack.c.l.b16 %v211
        %v355 = vunpack.c.l.b16 %v212
        %v356 = vpack.c.b16 %v349, %v348
        %v357 = vpack.c.b16 %v351, %v350
        %v358 = vpack.c.b16 %v353, %v352
        %v359 = vpack.c.b16 %v355, %v354
        %v363 = vunpack.c.l.b16 %v213
        %v364 = vunpack.c.l.b16 %v214
        %v365 = vunpack.c.l.b16 %v215
        %v366 = vpack.c.b16 %v364, %v363
        %v367 = vpack.c.b16 %v365, %v365
        %v370 = vsel %vm258, %v356, 0
        %v373 = vsel %vm258, %v357, 0
        %v376 = vsel %vm258, %v358, 0
        %v379 = vsel %vm258, %v359, 0
        %v382 = vsel %vm271, %v367, 0
        %384 = vmatprep.subr.bf16.mxu0 0
        %385 = vmatpush1.bf16.msra.mxu0 %v366
        %386 = vmatprep.subr.bf16.mxu0 0
        %387 = vmatpush1.bf16.msra.mxu0 %v382
        %388 = vmatprep.subr.bf16.mxu0 0
        %389 = vmatpush1.bf16.msra.mxu0 0
        %390 = vmatprep.subr.bf16.mxu0 0
        %391 = vmatpush1.bf16.msra.mxu0 0
        %392 = vmatprep.subr.bf16.mxu0 0
        %393 = vmatpush1.bf16.msra.mxu0 0
        %394 = vmatprep.subr.bf16.mxu0 0
        %395 = vmatpush1.bf16.msra.mxu0 0
        %396 = vmatprep.subr.bf16.mxu0 0
        %397 = vmatpush1.bf16.msra.mxu0 0
        %398 = vmatprep.subr.bf16.mxu0 0
        %399 = vmatpush1.bf16.msra.mxu0 0
        %400 = vmatprep.subr.bf16.mxu0 0
        %401 = vmatpush1.bf16.msra.mxu0 0
        %402 = vmatprep.subr.bf16.mxu0 0
        %403 = vmatpush1.bf16.msra.mxu0 0
        %404 = vmatprep.subr.bf16.mxu0 0
        %405 = vmatpush1.bf16.msra.mxu0 0
        %406 = vmatprep.subr.bf16.mxu0 0
        %407 = vmatpush1.bf16.msra.mxu0 0
        %408 = vmatprep.subr.bf16.mxu0 0
        %409 = vmatpush1.bf16.msra.mxu0 0
        %410 = vmatprep.subr.bf16.mxu0 0
        %411 = vmatpush1.bf16.msra.mxu0 0
        %412 = vmatprep.subr.bf16.mxu0 0
        %413 = vmatpush1.bf16.msra.mxu0 0
        %414 = vmatprep.subr.bf16.mxu0 0
        %415 = vmatpush1.bf16.msra.mxu0 0
        %416 = vmatprep.mubr.bf16.mxu0 0
        %417 = vmatmul.mubr.bf16.gmra.mrb[0].mxu0 %v370
        %v418 = vpop.f32.mrb[0].mxu0
        %v419 = vadd.f32 %v310, %v418
        %v420 = vpop.f32.mrb[0].mxu0
        %v421 = vpop.f32.mrb[0].mxu0
        %v422 = vadd.f32 %v313, %v421
        %v423 = vpop.f32.mrb[0].mxu0
        %424 = vmatprep.mubr.bf16.mxu0 0
        %425 = vmatmul.mubr.bf16.gmra.mrb[0].mxu0 %v373
        %v426 = vpop.f32.mrb[0].mxu0
        %v427 = vadd.f32 %v318, %v426
        %v428 = vpop.f32.mrb[0].mxu0
        %v429 = vpop.f32.mrb[0].mxu0
        %v430 = vadd.f32 %v321, %v429
        %v431 = vpop.f32.mrb[0].mxu0
        %432 = vmatprep.mubr.bf16.mxu0 0
        %433 = vmatmul.mubr.bf16.gmra.mrb[0].mxu0 %v376
        %v434 = vpop.f32.mrb[0].mxu0
        %v435 = vadd.f32 %v326, %v434
        %v436 = vpop.f32.mrb[0].mxu0
        %v437 = vpop.f32.mrb[0].mxu0
        %v438 = vadd.f32 %v329, %v437
        %v439 = vpop.f32.mrb[0].mxu0
        %440 = vmatprep.mubr.bf16.mxu0 0
        %441 = vmatmul.mubr.bf16.gmra.mrb[0].mxu0 %v379
        %v442 = vpop.f32.mrb[0].mxu0
        %v443 = vadd.f32 %v334, %v442
        %v444 = vpop.f32.mrb[0].mxu0
        %v445 = vpop.f32.mrb[0].mxu0
        %v446 = vadd.f32 %v337, %v445
        %v447 = vpop.f32.mrb[0].mxu0
        %448 = vdwg.mxu0
        %s449 = scalar_lea.vmem %s177, 4 [#allocation4]
        %v450 = vld [vmem:[%s449] sm:$0xf]
        %v451 = vld [vmem:[%s449 + $0x4] sm:$0xf]
        %v452 = vld [vmem:[%s449 + $0x8] sm:$0xf]
        %v453 = vld [vmem:[%s449 + $0xc] sm:$0xf]
        %v454 = vld [vmem:[%s449 + $0x10] sm:$0xf]
        %v455 = vld [vmem:[%s449 + $0x14] sm:$0xf]
        %v456 = vld [vmem:[%s449 + $0x18] sm:$0xf]
        %v457 = vld [vmem:[%s449 + $0x1c] sm:$0xf]
        %s458 = scalar_lea.vmem [#allocation7], 24
        %v459 = vld [vmem:[%s458] sm:$0xf]
        %v460 = vld [vmem:[%s458 + $0x4] sm:$0xf]
        %v461 = vld [vmem:[%s458 + $0x8] sm:$0xf]
        %v470 = vunpack.c.l.b16 %v450
        %v471 = vunpack.c.l.b16 %v451
        %v472 = vunpack.c.l.b16 %v452
        %v473 = vunpack.c.l.b16 %v453
        %v474 = vunpack.c.l.b16 %v454
        %v475 = vunpack.c.l.b16 %v455
        %v476 = vunpack.c.l.b16 %v456
        %v477 = vunpack.c.l.b16 %v457
        %v478 = vpack.c.b16 %v471, %v470
        %v479 = vpack.c.b16 %v473, %v472
        %v480 = vpack.c.b16 %v475, %v474
        %v481 = vpack.c.b16 %v477, %v476
        %v485 = vunpack.c.l.b16 %v459
        %v486 = vunpack.c.l.b16 %v460
        %v487 = vunpack.c.l.b16 %v461
        %v488 = vpack.c.b16 %v486, %v485
        %v489 = vpack.c.b16 %v487, %v487
        %v492 = vsel %vm258, %v478, 0
        %v495 = vsel %vm258, %v479, 0
        %v498 = vsel %vm258, %v480, 0
        %v501 = vsel %vm258, %v481, 0
        %v504 = vsel %vm271, %v489, 0
        %506 = vmatprep.subr.bf16.mxu0 0
        %507 = vmatpush1.bf16.msra.mxu0 %v488
        %508 = vmatprep.subr.bf16.mxu0 0
        %509 = vmatpush1.bf16.msra.mxu0 %v504
        %510 = vmatprep.subr.bf16.mxu0 0
        %511 = vmatpush1.bf16.msra.mxu0 0
        %512 = vmatprep.subr.bf16.mxu0 0
        %513 = vmatpush1.bf16.msra.mxu0 0
        %514 = vmatprep.subr.bf16.mxu0 0
        %515 = vmatpush1.bf16.msra.mxu0 0
        %516 = vmatprep.subr.bf16.mxu0 0
        %517 = vmatpush1.bf16.msra.mxu0 0
        %518 = vmatprep.subr.bf16.mxu0 0
        %519 = vmatpush1.bf16.msra.mxu0 0
        %520 = vmatprep.subr.bf16.mxu0 0
        %521 = vmatpush1.bf16.msra.mxu0 0
        %522 = vmatprep.subr.bf16.mxu0 0
        %523 = vmatpush1.bf16.msra.mxu0 0
        %524 = vmatprep.subr.bf16.mxu0 0
        %525 = vmatpush1.bf16.msra.mxu0 0
        %526 = vmatprep.subr.bf16.mxu0 0
        %527 = vmatpush1.bf16.msra.mxu0 0
        %528 = vmatprep.subr.bf16.mxu0 0
        %529 = vmatpush1.bf16.msra.mxu0 0
        %530 = vmatprep.subr.bf16.mxu0 0
        %531 = vmatpush1.bf16.msra.mxu0 0
        %532 = vmatprep.subr.bf16.mxu0 0
        %533 = vmatpush1.bf16.msra.mxu0 0
        %534 = vmatprep.subr.bf16.mxu0 0
        %535 = vmatpush1.bf16.msra.mxu0 0
        %536 = vmatprep.subr.bf16.mxu0 0
        %537 = vmatpush1.bf16.msra.mxu0 0
        %538 = vmatprep.mubr.bf16.mxu0 0
        %539 = vmatmul.mubr.bf16.gmra.mrb[0].mxu0 %v492
        %v540 = vpop.f32.mrb[0].mxu0
        %v541 = vadd.f32 0.0, %v540
        %v542 = vpop.f32.mrb[0].mxu0
        %v543 = vpop.f32.mrb[0].mxu0
        %v544 = vadd.f32 0.0, %v543
        %v545 = vpop.f32.mrb[0].mxu0
        %546 = vmatprep.mubr.bf16.mxu0 0
        %547 = vmatmul.mubr.bf16.gmra.mrb[0].mxu0 %v495
        %v548 = vpop.f32.mrb[0].mxu0
        %v549 = vadd.f32 0.0, %v548
        %v550 = vpop.f32.mrb[0].mxu0
        %v551 = vpop.f32.mrb[0].mxu0
        %v552 = vadd.f32 0.0, %v551
        %v553 = vpop.f32.mrb[0].mxu0
        %554 = vmatprep.mubr.bf16.mxu0 0
        %555 = vmatmul.mubr.bf16.gmra.mrb[0].mxu0 %v498
        %v556 = vpop.f32.mrb[0].mxu0
        %v557 = vadd.f32 0.0, %v556
        %v558 = vpop.f32.mrb[0].mxu0
        %v559 = vpop.f32.mrb[0].mxu0
        %v560 = vadd.f32 0.0, %v559
        %v561 = vpop.f32.mrb[0].mxu0
        %562 = vmatprep.mubr.bf16.mxu0 0
        %563 = vmatmul.mubr.bf16.gmra.mrb[0].mxu0 %v501
        %v564 = vpop.f32.mrb[0].mxu0
        %v565 = vadd.f32 0.0, %v564
        %v566 = vpop.f32.mrb[0].mxu0
        %v567 = vpop.f32.mrb[0].mxu0
        %v568 = vadd.f32 0.0, %v567
        %v569 = vpop.f32.mrb[0].mxu0
        %570 = vdwg.mxu0
        %v571 = vadd.f32 %v419, %v541
        %v572 = vadd.f32 %v422, %v544
        %v573 = vadd.f32 %v427, %v549
        %v574 = vadd.f32 %v430, %v552
        %v575 = vadd.f32 %v435, %v557
        %v576 = vadd.f32 %v438, %v560
        %v577 = vadd.f32 %v443, %v565
        %v578 = vadd.f32 %v446, %v568
        %s579 = scalar_lea.vmem %s177, 48 [#allocation4]
        %v580 = vld [vmem:[%s579] sm:$0xf]
        %v581 = vld [vmem:[%s579 + $0x4] sm:$0xf]
        %v582 = vld [vmem:[%s579 + $0x8] sm:$0xf]
        %v583 = vld [vmem:[%s579 + $0xc] sm:$0xf]
        %v584 = vld [vmem:[%s579 + $0x10] sm:$0xf]
        %v585 = vld [vmem:[%s579 + $0x14] sm:$0xf]
        %v586 = vld [vmem:[%s579 + $0x18] sm:$0xf]
        %v587 = vld [vmem:[%s579 + $0x1c] sm:$0xf]
        %s588 = scalar_lea.vmem [#allocation7], 36
        %v589 = vld [vmem:[%s588] sm:$0xf]
        %v590 = vld [vmem:[%s588 + $0x4] sm:$0xf]
        %v591 = vld [vmem:[%s588 + $0x8] sm:$0xf]
        %v600 = vunpack.c.l.b16 %v580
        %v601 = vunpack.c.l.b16 %v581
        %v602 = vunpack.c.l.b16 %v582
        %v603 = vunpack.c.l.b16 %v583
        %v604 = vunpack.c.l.b16 %v584
        %v605 = vunpack.c.l.b16 %v585
        %v606 = vunpack.c.l.b16 %v586
        %v607 = vunpack.c.l.b16 %v587
        %v608 = vpack.c.b16 %v601, %v600
        %v609 = vpack.c.b16 %v603, %v602
        %v610 = vpack.c.b16 %v605, %v604
        %v611 = vpack.c.b16 %v607, %v606
        %v615 = vunpack.c.l.b16 %v589
        %v616 = vunpack.c.l.b16 %v590
        %v617 = vunpack.c.l.b16 %v591
        %v618 = vpack.c.b16 %v616, %v615
        %v619 = vpack.c.b16 %v617, %v617
        %v622 = vsel %vm258, %v608, 0
        %v625 = vsel %vm258, %v609, 0
        %v628 = vsel %vm258, %v610, 0
        %v631 = vsel %vm258, %v611, 0
        %v634 = vsel %vm271, %v619, 0
        %636 = vmatprep.subr.bf16.mxu0 0
        %637 = vmatpush1.bf16.msra.mxu0 %v618
        %638 = vmatprep.subr.bf16.mxu0 0
        %639 = vmatpush1.bf16.msra.mxu0 %v634
        %640 = vmatprep.subr.bf16.mxu0 0
        %641 = vmatpush1.bf16.msra.mxu0 0
        %642 = vmatprep.subr.bf16.mxu0 0
        %643 = vmatpush1.bf16.msra.mxu0 0
        %644 = vmatprep.subr.bf16.mxu0 0
        %645 = vmatpush1.bf16.msra.mxu0 0
        %646 = vmatprep.subr.bf16.mxu0 0
        %647 = vmatpush1.bf16.msra.mxu0 0
        %648 = vmatprep.subr.bf16.mxu0 0
        %649 = vmatpush1.bf16.msra.mxu0 0
        %650 = vmatprep.subr.bf16.mxu0 0
        %651 = vmatpush1.bf16.msra.mxu0 0
        %652 = vmatprep.subr.bf16.mxu0 0
        %653 = vmatpush1.bf16.msra.mxu0 0
        %654 = vmatprep.subr.bf16.mxu0 0
        %655 = vmatpush1.bf16.msra.mxu0 0
        %656 = vmatprep.subr.bf16.mxu0 0
        %657 = vmatpush1.bf16.msra.mxu0 0
        %658 = vmatprep.subr.bf16.mxu0 0
        %659 = vmatpush1.bf16.msra.mxu0 0
        %660 = vmatprep.subr.bf16.mxu0 0
        %661 = vmatpush1.bf16.msra.mxu0 0
        %662 = vmatprep.subr.bf16.mxu0 0
        %663 = vmatpush1.bf16.msra.mxu0 0
        %664 = vmatprep.subr.bf16.mxu0 0
        %665 = vmatpush1.bf16.msra.mxu0 0
        %666 = vmatprep.subr.bf16.mxu0 0
        %667 = vmatpush1.bf16.msra.mxu0 0
        %668 = vmatprep.mubr.bf16.mxu0 0
        %669 = vmatmul.mubr.bf16.gmra.mrb[0].mxu0 %v622
        %v670 = vpop.f32.mrb[0].mxu0
        %v671 = vadd.f32 0.0, %v670
        %v672 = vpop.f32.mrb[0].mxu0
        %v673 = vpop.f32.mrb[0].mxu0
        %v674 = vadd.f32 0.0, %v673
        %v675 = vpop.f32.mrb[0].mxu0
        %676 = vmatprep.mubr.bf16.mxu0 0
        %677 = vmatmul.mubr.bf16.gmra.mrb[0].mxu0 %v625
        %v678 = vpop.f32.mrb[0].mxu0
        %v679 = vadd.f32 0.0, %v678
        %v680 = vpop.f32.mrb[0].mxu0
        %v681 = vpop.f32.mrb[0].mxu0
        %v682 = vadd.f32 0.0, %v681
        %v683 = vpop.f32.mrb[0].mxu0
        %684 = vmatprep.mubr.bf16.mxu0 0
        %685 = vmatmul.mubr.bf16.gmra.mrb[0].mxu0 %v628
        %v686 = vpop.f32.mrb[0].mxu0
        %v687 = vadd.f32 0.0, %v686
        %v688 = vpop.f32.mrb[0].mxu0
        %v689 = vpop.f32.mrb[0].mxu0
        %v690 = vadd.f32 0.0, %v689
        %v691 = vpop.f32.mrb[0].mxu0
        %692 = vmatprep.mubr.bf16.mxu0 0
        %693 = vmatmul.mubr.bf16.gmra.mrb[0].mxu0 %v631
        %v694 = vpop.f32.mrb[0].mxu0
        %v695 = vadd.f32 0.0, %v694
        %v696 = vpop.f32.mrb[0].mxu0
        %v697 = vpop.f32.mrb[0].mxu0
        %v698 = vadd.f32 0.0, %v697
        %v699 = vpop.f32.mrb[0].mxu0
        %700 = vdwg.mxu0
        %v701 = vadd.f32 %v571, %v671
        %v702 = vadd.f32 %v572, %v674
        %v703 = vadd.f32 %v573, %v679
        %v704 = vadd.f32 %v574, %v682
        %v705 = vadd.f32 %v575, %v687
        %v706 = vadd.f32 %v576, %v690
        %v707 = vadd.f32 %v577, %v695
        %v708 = vadd.f32 %v578, %v698
        %s709 = scalar_lea.vmem %s177, 8 [#allocation4]
        %v710 = vld [vmem:[%s709] sm:$0xf]
        %v711 = vld [vmem:[%s709 + $0x4] sm:$0xf]
        %v712 = vld [vmem:[%s709 + $0x8] sm:$0xf]
        %v713 = vld [vmem:[%s709 + $0xc] sm:$0xf]
        %v714 = vld [vmem:[%s709 + $0x10] sm:$0xf]
        %v715 = vld [vmem:[%s709 + $0x14] sm:$0xf]
        %v716 = vld [vmem:[%s709 + $0x18] sm:$0xf]
        %v717 = vld [vmem:[%s709 + $0x1c] sm:$0xf]
        %s718 = scalar_lea.vmem [#allocation7], 48
        %v719 = vld [vmem:[%s718] sm:$0xf]
        %v720 = vld [vmem:[%s718 + $0x4] sm:$0xf]
        %v721 = vld [vmem:[%s718 + $0x8] sm:$0xf]
        %v730 = vunpack.c.l.b16 %v710
        %v731 = vunpack.c.l.b16 %v711
        %v732 = vunpack.c.l.b16 %v712
        %v733 = vunpack.c.l.b16 %v713
        %v734 = vunpack.c.l.b16 %v714
        %v735 = vunpack.c.l.b16 %v715
        %v736 = vunpack.c.l.b16 %v716
        %v737 = vunpack.c.l.b16 %v717
        %v738 = vpack.c.b16 %v731, %v730
        %v739 = vpack.c.b16 %v733, %v732
        %v740 = vpack.c.b16 %v735, %v734
        %v741 = vpack.c.b16 %v737, %v736
        %v745 = vunpack.c.l.b16 %v719
        %v746 = vunpack.c.l.b16 %v720
        %v747 = vunpack.c.l.b16 %v721
        %v748 = vpack.c.b16 %v746, %v745
        %v749 = vpack.c.b16 %v747, %v747
        %v752 = vsel %vm258, %v738, 0
        %v755 = vsel %vm258, %v739, 0
        %v758 = vsel %vm258, %v740, 0
        %v761 = vsel %vm258, %v741, 0
        %v764 = vsel %vm271, %v749, 0
        %766 = vmatprep.subr.bf16.mxu0 0
        %767 = vmatpush1.bf16.msra.mxu0 %v748
        %768 = vmatprep.subr.bf16.mxu0 0
        %769 = vmatpush1.bf16.msra.mxu0 %v764
        %770 = vmatprep.subr.bf16.mxu0 0
        %771 = vmatpush1.bf16.msra.mxu0 0
        %772 = vmatprep.subr.bf16.mxu0 0
        %773 = vmatpush1.bf16.msra.mxu0 0
        %774 = vmatprep.subr.bf16.mxu0 0
        %775 = vmatpush1.bf16.msra.mxu0 0
        %776 = vmatprep.subr.bf16.mxu0 0
        %777 = vmatpush1.bf16.msra.mxu0 0
        %778 = vmatprep.subr.bf16.mxu0 0
        %779 = vmatpush1.bf16.msra.mxu0 0
        %780 = vmatprep.subr.bf16.mxu0 0
        %781 = vmatpush1.bf16.msra.mxu0 0
        %782 = vmatprep.subr.bf16.mxu0 0
        %783 = vmatpush1.bf16.msra.mxu0 0
        %784 = vmatprep.subr.bf16.mxu0 0
        %785 = vmatpush1.bf16.msra.mxu0 0
        %786 = vmatprep.subr.bf16.mxu0 0
        %787 = vmatpush1.bf16.msra.mxu0 0
        %788 = vmatprep.subr.bf16.mxu0 0
        %789 = vmatpush1.bf16.msra.mxu0 0
        %790 = vmatprep.subr.bf16.mxu0 0
        %791 = vmatpush1.bf16.msra.mxu0 0
        %792 = vmatprep.subr.bf16.mxu0 0
        %793 = vmatpush1.bf16.msra.mxu0 0
        %794 = vmatprep.subr.bf16.mxu0 0
        %795 = vmatpush1.bf16.msra.mxu0 0
        %796 = vmatprep.subr.bf16.mxu0 0
        %797 = vmatpush1.bf16.msra.mxu0 0
        %798 = vmatprep.mubr.bf16.mxu0 0
        %799 = vmatmul.mubr.bf16.gmra.mrb[0].mxu0 %v752
        %v800 = vpop.f32.mrb[0].mxu0
        %v801 = vadd.f32 0.0, %v800
        %v802 = vpop.f32.mrb[0].mxu0
        %v803 = vpop.f32.mrb[0].mxu0
        %v804 = vadd.f32 0.0, %v803
        %v805 = vpop.f32.mrb[0].mxu0
        %806 = vmatprep.mubr.bf16.mxu0 0
        %807 = vmatmul.mubr.bf16.gmra.mrb[0].mxu0 %v755
        %v808 = vpop.f32.mrb[0].mxu0
        %v809 = vadd.f32 0.0, %v808
        %v810 = vpop.f32.mrb[0].mxu0
        %v811 = vpop.f32.mrb[0].mxu0
        %v812 = vadd.f32 0.0, %v811
        %v813 = vpop.f32.mrb[0].mxu0
        %814 = vmatprep.mubr.bf16.mxu0 0
        %815 = vmatmul.mubr.bf16.gmra.mrb[0].mxu0 %v758
        %v816 = vpop.f32.mrb[0].mxu0
        %v817 = vadd.f32 0.0, %v816
        %v818 = vpop.f32.mrb[0].mxu0
        %v819 = vpop.f32.mrb[0].mxu0
        %v820 = vadd.f32 0.0, %v819
        %v821 = vpop.f32.mrb[0].mxu0
        %822 = vmatprep.mubr.bf16.mxu0 0
        %823 = vmatmul.mubr.bf16.gmra.mrb[0].mxu0 %v761
        %v824 = vpop.f32.mrb[0].mxu0
        %v825 = vadd.f32 0.0, %v824
        %v826 = vpop.f32.mrb[0].mxu0
        %v827 = vpop.f32.mrb[0].mxu0
        %v828 = vadd.f32 0.0, %v827
        %v829 = vpop.f32.mrb[0].mxu0
        %830 = vdwg.mxu0
        %v831 = vadd.f32 %v701, %v801
        %v832 = vadd.f32 %v702, %v804
        %v833 = vadd.f32 %v703, %v809
        %v834 = vadd.f32 %v704, %v812
        %v835 = vadd.f32 %v705, %v817
        %v836 = vadd.f32 %v706, %v820
        %v837 = vadd.f32 %v707, %v825
        %v838 = vadd.f32 %v708, %v828
        %s839 = scalar_lea.vmem %s177, 52 [#allocation4]
        %v840 = vld [vmem:[%s839] sm:$0xf]
        %v841 = vld [vmem:[%s839 + $0x4] sm:$0xf]
        %v842 = vld [vmem:[%s839 + $0x8] sm:$0xf]
        %v843 = vld [vmem:[%s839 + $0xc] sm:$0xf]
        %v844 = vld [vmem:[%s839 + $0x10] sm:$0xf]
        %v845 = vld [vmem:[%s839 + $0x14] sm:$0xf]
        %v846 = vld [vmem:[%s839 + $0x18] sm:$0xf]
        %v847 = vld [vmem:[%s839 + $0x1c] sm:$0xf]
        %s848 = scalar_lea.vmem [#allocation7], 60
        %v849 = vld [vmem:[%s848] sm:$0xf]
        %v850 = vld [vmem:[%s848 + $0x4] sm:$0xf]
        %v851 = vld [vmem:[%s848 + $0x8] sm:$0xf]
        %v860 = vunpack.c.l.b16 %v840
        %v861 = vunpack.c.l.b16 %v841
        %v862 = vunpack.c.l.b16 %v842
        %v863 = vunpack.c.l.b16 %v843
        %v864 = vunpack.c.l.b16 %v844
        %v865 = vunpack.c.l.b16 %v845
        %v866 = vunpack.c.l.b16 %v846
        %v867 = vunpack.c.l.b16 %v847
        %v868 = vpack.c.b16 %v861, %v860
        %v869 = vpack.c.b16 %v863, %v862
        %v870 = vpack.c.b16 %v865, %v864
        %v871 = vpack.c.b16 %v867, %v866
        %v875 = vunpack.c.l.b16 %v849
        %v876 = vunpack.c.l.b16 %v850
        %v877 = vunpack.c.l.b16 %v851
        %v878 = vpack.c.b16 %v876, %v875
        %v879 = vpack.c.b16 %v877, %v877
        %v882 = vsel %vm258, %v868, 0
        %v885 = vsel %vm258, %v869, 0
        %v888 = vsel %vm258, %v870, 0
        %v891 = vsel %vm258, %v871, 0
        %v894 = vsel %vm271, %v879, 0
        %896 = vmatprep.subr.bf16.mxu0 0
        %897 = vmatpush1.bf16.msra.mxu0 %v878
        %898 = vmatprep.subr.bf16.mxu0 0
        %899 = vmatpush1.bf16.msra.mxu0 %v894
        %900 = vmatprep.subr.bf16.mxu0 0
        %901 = vmatpush1.bf16.msra.mxu0 0
        %902 = vmatprep.subr.bf16.mxu0 0
        %903 = vmatpush1.bf16.msra.mxu0 0
        %904 = vmatprep.subr.bf16.mxu0 0
        %905 = vmatpush1.bf16.msra.mxu0 0
        %906 = vmatprep.subr.bf16.mxu0 0
        %907 = vmatpush1.bf16.msra.mxu0 0
        %908 = vmatprep.subr.bf16.mxu0 0
        %909 = vmatpush1.bf16.msra.mxu0 0
        %910 = vmatprep.subr.bf16.mxu0 0
        %911 = vmatpush1.bf16.msra.mxu0 0
        %912 = vmatprep.subr.bf16.mxu0 0
        %913 = vmatpush1.bf16.msra.mxu0 0
        %914 = vmatprep.subr.bf16.mxu0 0
        %915 = vmatpush1.bf16.msra.mxu0 0
        %916 = vmatprep.subr.bf16.mxu0 0
        %917 = vmatpush1.bf16.msra.mxu0 0
        %918 = vmatprep.subr.bf16.mxu0 0
        %919 = vmatpush1.bf16.msra.mxu0 0
        %920 = vmatprep.subr.bf16.mxu0 0
        %921 = vmatpush1.bf16.msra.mxu0 0
        %922 = vmatprep.subr.bf16.mxu0 0
        %923 = vmatpush1.bf16.msra.mxu0 0
        %924 = vmatprep.subr.bf16.mxu0 0
        %925 = vmatpush1.bf16.msra.mxu0 0
        %926 = vmatprep.subr.bf16.mxu0 0
        %927 = vmatpush1.bf16.msra.mxu0 0
        %928 = vmatprep.mubr.bf16.mxu0 0
        %929 = vmatmul.mubr.bf16.gmra.mrb[0].mxu0 %v882
        %v930 = vpop.f32.mrb[0].mxu0
        %v931 = vadd.f32 0.0, %v930
        %v932 = vpop.f32.mrb[0].mxu0
        %v933 = vpop.f32.mrb[0].mxu0
        %v934 = vadd.f32 0.0, %v933
        %v935 = vpop.f32.mrb[0].mxu0
        %936 = vmatprep.mubr.bf16.mxu0 0
        %937 = vmatmul.mubr.bf16.gmra.mrb[0].mxu0 %v885
        %v938 = vpop.f32.mrb[0].mxu0
        %v939 = vadd.f32 0.0, %v938
        %v940 = vpop.f32.mrb[0].mxu0
        %v941 = vpop.f32.mrb[0].mxu0
        %v942 = vadd.f32 0.0, %v941
        %v943 = vpop.f32.mrb[0].mxu0
        %944 = vmatprep.mubr.bf16.mxu0 0
        %945 = vmatmul.mubr.bf16.gmra.mrb[0].mxu0 %v888
        %v946 = vpop.f32.mrb[0].mxu0
        %v947 = vadd.f32 0.0, %v946
        %v948 = vpop.f32.mrb[0].mxu0
        %v949 = vpop.f32.mrb[0].mxu0
        %v950 = vadd.f32 0.0, %v949
        %v951 = vpop.f32.mrb[0].mxu0
        %952 = vmatprep.mubr.bf16.mxu0 0
        %953 = vmatmul.mubr.bf16.gmra.mrb[0].mxu0 %v891
        %v954 = vpop.f32.mrb[0].mxu0
        %v955 = vadd.f32 0.0, %v954
        %v956 = vpop.f32.mrb[0].mxu0
        %v957 = vpop.f32.mrb[0].mxu0
        %v958 = vadd.f32 0.0, %v957
        %v959 = vpop.f32.mrb[0].mxu0
        %960 = vdwg.mxu0
        %v961 = vadd.f32 %v831, %v931
        %v962 = vadd.f32 %v832, %v934
        %v963 = vadd.f32 %v833, %v939
        %v964 = vadd.f32 %v834, %v942
        %v965 = vadd.f32 %v835, %v947
        %v966 = vadd.f32 %v836, %v950
        %v967 = vadd.f32 %v837, %v955
        %v968 = vadd.f32 %v838, %v958
        %s969 = scalar_lea.vmem %s177, 12 [#allocation4]
        %v970 = vld [vmem:[%s969] sm:$0xf]
        %v971 = vld [vmem:[%s969 + $0x4] sm:$0xf]
        %v972 = vld [vmem:[%s969 + $0x8] sm:$0xf]
        %v973 = vld [vmem:[%s969 + $0xc] sm:$0xf]
        %v974 = vld [vmem:[%s969 + $0x10] sm:$0xf]
        %v975 = vld [vmem:[%s969 + $0x14] sm:$0xf]
        %v976 = vld [vmem:[%s969 + $0x18] sm:$0xf]
        %v977 = vld [vmem:[%s969 + $0x1c] sm:$0xf]
        %s978 = scalar_lea.vmem [#allocation7], 72
        %v979 = vld [vmem:[%s978] sm:$0xf]
        %v980 = vld [vmem:[%s978 + $0x4] sm:$0xf]
        %v981 = vld [vmem:[%s978 + $0x8] sm:$0xf]
        %v990 = vunpack.c.l.b16 %v970
        %v991 = vunpack.c.l.b16 %v971
        %v992 = vunpack.c.l.b16 %v972
        %v993 = vunpack.c.l.b16 %v973
        %v994 = vunpack.c.l.b16 %v974
        %v995 = vunpack.c.l.b16 %v975
        %v996 = vunpack.c.l.b16 %v976
        %v997 = vunpack.c.l.b16 %v977
        %v998 = vpack.c.b16 %v991, %v990
        %v999 = vpack.c.b16 %v993, %v992
        %v1000 = vpack.c.b16 %v995, %v994
        %v1001 = vpack.c.b16 %v997, %v996
        %v1005 = vunpack.c.l.b16 %v979
        %v1006 = vunpack.c.l.b16 %v980
        %v1007 = vunpack.c.l.b16 %v981
        %v1008 = vpack.c.b16 %v1006, %v1005
        %v1009 = vpack.c.b16 %v1007, %v1007
        %v1012 = vsel %vm258, %v998, 0
        %v1015 = vsel %vm258, %v999, 0
        %v1018 = vsel %vm258, %v1000, 0
        %v1021 = vsel %vm258, %v1001, 0
        %v1024 = vsel %vm271, %v1009, 0
        %1026 = vmatprep.subr.bf16.mxu0 0
        %1027 = vmatpush1.bf16.msra.mxu0 %v1008
        %1028 = vmatprep.subr.bf16.mxu0 0
        %1029 = vmatpush1.bf16.msra.mxu0 %v1024
        %1030 = vmatprep.subr.bf16.mxu0 0
        %1031 = vmatpush1.bf16.msra.mxu0 0
        %1032 = vmatprep.subr.bf16.mxu0 0
        %1033 = vmatpush1.bf16.msra.mxu0 0
        %1034 = vmatprep.subr.bf16.mxu0 0
        %1035 = vmatpush1.bf16.msra.mxu0 0
        %1036 = vmatprep.subr.bf16.mxu0 0
        %1037 = vmatpush1.bf16.msra.mxu0 0
        %1038 = vmatprep.subr.bf16.mxu0 0
        %1039 = vmatpush1.bf16.msra.mxu0 0
        %1040 = vmatprep.subr.bf16.mxu0 0
        %1041 = vmatpush1.bf16.msra.mxu0 0
        %1042 = vmatprep.subr.bf16.mxu0 0
        %1043 = vmatpush1.bf16.msra.mxu0 0
        %1044 = vmatprep.subr.bf16.mxu0 0
        %1045 = vmatpush1.bf16.msra.mxu0 0
        %1046 = vmatprep.subr.bf16.mxu0 0
        %1047 = vmatpush1.bf16.msra.mxu0 0
        %1048 = vmatprep.subr.bf16.mxu0 0
        %1049 = vmatpush1.bf16.msra.mxu0 0
        %1050 = vmatprep.subr.bf16.mxu0 0
        %1051 = vmatpush1.bf16.msra.mxu0 0
        %1052 = vmatprep.subr.bf16.mxu0 0
        %1053 = vmatpush1.bf16.msra.mxu0 0
        %1054 = vmatprep.subr.bf16.mxu0 0
        %1055 = vmatpush1.bf16.msra.mxu0 0
        %1056 = vmatprep.subr.bf16.mxu0 0
        %1057 = vmatpush1.bf16.msra.mxu0 0
        %1058 = vmatprep.mubr.bf16.mxu0 0
        %1059 = vmatmul.mubr.bf16.gmra.mrb[0].mxu0 %v1012
        %v1060 = vpop.f32.mrb[0].mxu0
        %v1061 = vadd.f32 0.0, %v1060
        %v1062 = vpop.f32.mrb[0].mxu0
        %v1063 = vpop.f32.mrb[0].mxu0
        %v1064 = vadd.f32 0.0, %v1063
        %v1065 = vpop.f32.mrb[0].mxu0
        %1066 = vmatprep.mubr.bf16.mxu0 0
        %1067 = vmatmul.mubr.bf16.gmra.mrb[0].mxu0 %v1015
        %v1068 = vpop.f32.mrb[0].mxu0
        %v1069 = vadd.f32 0.0, %v1068
        %v1070 = vpop.f32.mrb[0].mxu0
        %v1071 = vpop.f32.mrb[0].mxu0
        %v1072 = vadd.f32 0.0, %v1071
        %v1073 = vpop.f32.mrb[0].mxu0
        %1074 = vmatprep.mubr.bf16.mxu0 0
        %1075 = vmatmul.mubr.bf16.gmra.mrb[0].mxu0 %v1018
        %v1076 = vpop.f32.mrb[0].mxu0
        %v1077 = vadd.f32 0.0, %v1076
        %v1078 = vpop.f32.mrb[0].mxu0
        %v1079 = vpop.f32.mrb[0].mxu0
        %v1080 = vadd.f32 0.0, %v1079
        %v1081 = vpop.f32.mrb[0].mxu0
        %1082 = vmatprep.mubr.bf16.mxu0 0
        %1083 = vmatmul.mubr.bf16.gmra.mrb[0].mxu0 %v1021
        %v1084 = vpop.f32.mrb[0].mxu0
        %v1085 = vadd.f32 0.0, %v1084
        %v1086 = vpop.f32.mrb[0].mxu0
        %v1087 = vpop.f32.mrb[0].mxu0
        %v1088 = vadd.f32 0.0, %v1087
        %v1089 = vpop.f32.mrb[0].mxu0
        %1090 = vdwg.mxu0
        %v1091 = vadd.f32 %v961, %v1061
        %v1092 = vadd.f32 %v962, %v1064
        %v1093 = vadd.f32 %v963, %v1069
        %v1094 = vadd.f32 %v964, %v1072
        %v1095 = vadd.f32 %v965, %v1077
        %v1096 = vadd.f32 %v966, %v1080
        %v1097 = vadd.f32 %v967, %v1085
        %v1098 = vadd.f32 %v968, %v1088
        %v1099 = vld [vmem:[%s2] sm:$0x1]
        %v1101 = vlaneseq
        %v1102 = vshrl.u32 %v1101, 7
        %v1103 = vsub.s32 0, %v1102
        %v1104 = vrot.slane %v1099, %v1103
        %v1106 = vadd.f32 %v1091, %v1104
        %v1107 = vadd.f32 %v1092, %v1104
        %v1108 = vadd.f32 %v1093, %v1104
        %v1109 = vadd.f32 %v1094, %v1104
        %v1110 = vadd.f32 %v1095, %v1104
        %v1111 = vadd.f32 %v1096, %v1104
        %v1112 = vadd.f32 %v1097, %v1104
        %v1113 = vadd.f32 %v1098, %v1104
        %v1114 = vmax.f32 %v1106, 0.0
        %v1115 = vmax.f32 %v1107, 0.0
        %v1116 = vmax.f32 %v1108, 0.0
        %v1117 = vmax.f32 %v1109, 0.0
        %v1118 = vmax.f32 %v1110, 0.0
        %v1119 = vmax.f32 %v1111, 0.0
        %v1120 = vmax.f32 %v1112, 0.0
        %v1121 = vmax.f32 %v1113, 0.0
        %1122 = vst [vmem:[#allocation2] sm:$0xff] 0.0
        %1123 = vst [vmem:[#allocation2 + $0x8] sm:$0x3] 0.0
        %1124 = vst [vmem:[#allocation2 + $0x10] sm:$0xff] 0.0
        %1125 = vst [vmem:[#allocation2 + $0x18] sm:$0x3] 0.0
        %1126 = vst [vmem:[#allocation2 + $0x20] sm:$0xff] 0.0
        %1127 = vst [vmem:[#allocation2 + $0x28] sm:$0x3] 0.0
        %1128 = vst [vmem:[#allocation2 + $0x30] sm:$0xff] 0.0
        %1129 = vst [vmem:[#allocation2 + $0x38] sm:$0x3] 0.0
        %1130 = vst [vmem:[#allocation2 + $0x40] sm:$0xff] 0.0
        %1131 = vst [vmem:[#allocation2 + $0x48] sm:$0x3] 0.0
        %1132 = vst [vmem:[#allocation2 + $0x50] sm:$0xff] 0.0
        %1133 = vst [vmem:[#allocation2 + $0x58] sm:$0x3] 0.0
        %1134 = vst [vmem:[#allocation2 + $0x60] sm:$0xff] 0.0
        %1135 = vst [vmem:[#allocation2 + $0x68] sm:$0x3] 0.0
        %1136 = vst [vmem:[#allocation2 + $0x70] sm:$0xff] 0.0
        %1137 = vst [vmem:[#allocation2 + $0x78] sm:$0x3] 0.0
        %1138 = vst [vmem:[#allocation2 + $0x80] sm:$0xff] 0.0
        %1139 = vst [vmem:[#allocation2 + $0x88] sm:$0x3] 0.0
        %1140 = vst [vmem:[#allocation2 + $0x90] sm:$0xff] 0.0
        %1141 = vst [vmem:[#allocation2 + $0x98] sm:$0x3] 0.0
        %s1142 = scalar_lea.vmem [#allocation2], 16
        %1143 = vst [vmem:[%s1142 + $0x1] sm:$0xff] %v1114
        %1144 = vst [vmem:[%s1142 + $0x11] sm:$0xff] %v1115
        %1145 = vst [vmem:[%s1142 + $0x21] sm:$0xff] %v1116
        %1146 = vst [vmem:[%s1142 + $0x31] sm:$0xff] %v1117
        %1147 = vst [vmem:[%s1142 + $0x41] sm:$0xff] %v1118
        %1148 = vst [vmem:[%s1142 + $0x51] sm:$0xff] %v1119
        %1149 = vst [vmem:[%s1142 + $0x61] sm:$0xff] %v1120
        %1150 = vst [vmem:[%s1142 + $0x71] sm:$0xff] %v1121
        %v1151 = vld [vmem:[#allocation2] ss:$2 sm:$0xf]
        %s1152 = scalar_lea.vmem [#allocation2], 16
        %v1153 = vld [vmem:[%s1152] ss:$2 sm:$0xf]
        %s1154 = scalar_lea.vmem [#allocation2], 32
        %v1155 = vld [vmem:[%s1154] ss:$2 sm:$0xf]
        %s1156 = scalar_lea.vmem [#allocation2], 48
        %v1157 = vld [vmem:[%s1156] ss:$2 sm:$0xf]
        %s1158 = scalar_lea.vmem [#allocation2], 64
        %v1159 = vld [vmem:[%s1158] ss:$2 sm:$0xf]
        %s1160 = scalar_lea.vmem [#allocation2], 80
        %v1161 = vld [vmem:[%s1160] ss:$2 sm:$0xf]
        %s1162 = scalar_lea.vmem [#allocation2], 96
        %v1163 = vld [vmem:[%s1162] ss:$2 sm:$0xf]
        %s1164 = scalar_lea.vmem [#allocation2], 112
        %v1165 = vld [vmem:[%s1164] ss:$2 sm:$0xf]
        %s1166 = scalar_lea.vmem [#allocation2], 128
        %v1167 = vld [vmem:[%s1166] ss:$2 sm:$0xf]
        %s1168 = scalar_lea.vmem [#allocation2], 144
        %v1169 = vld [vmem:[%s1168] ss:$2 sm:$0xf]
        %s1170 = scalar_lea.vmem [#allocation2], 1
        %v1171 = vld [vmem:[%s1170] ss:$2 sm:$0xf]
        %s1172 = scalar_lea.vmem [#allocation2], 17
        %v1173 = vld [vmem:[%s1172] ss:$2 sm:$0xf]
        %s1174 = scalar_lea.vmem [#allocation2], 33
        %v1175 = vld [vmem:[%s1174] ss:$2 sm:$0xf]
        %s1176 = scalar_lea.vmem [#allocation2], 49
        %v1177 = vld [vmem:[%s1176] ss:$2 sm:$0xf]
        %s1178 = scalar_lea.vmem [#allocation2], 65
        %v1179 = vld [vmem:[%s1178] ss:$2 sm:$0xf]
        %s1180 = scalar_lea.vmem [#allocation2], 81
        %v1181 = vld [vmem:[%s1180] ss:$2 sm:$0xf]
        %s1182 = scalar_lea.vmem [#allocation2], 97
        %v1183 = vld [vmem:[%s1182] ss:$2 sm:$0xf]
        %s1184 = scalar_lea.vmem [#allocation2], 113
        %v1185 = vld [vmem:[%s1184] ss:$2 sm:$0xf]
        %s1186 = scalar_lea.vmem [#allocation2], 129
        %v1187 = vld [vmem:[%s1186] ss:$2 sm:$0xf]
        %s1188 = scalar_lea.vmem [#allocation2], 145
        %v1189 = vld [vmem:[%s1188] ss:$2 sm:$0xf]
        %v1190 = vmax.f32 %v1151, %v1171
        %v1191 = vmax.f32 %v1153, %v1173
        %v1192 = vmax.f32 %v1155, %v1175
        %v1193 = vmax.f32 %v1157, %v1177
        %v1194 = vmax.f32 %v1159, %v1179
        %v1195 = vmax.f32 %v1161, %v1181
        %v1196 = vmax.f32 %v1163, %v1183
        %v1197 = vmax.f32 %v1165, %v1185
        %v1198 = vmax.f32 %v1167, %v1187
        %v1199 = vmax.f32 %v1169, %v1189
        %s1200 = scalar_lea.vmem [#allocation2], 2
        %v1201 = vld [vmem:[%s1200] ss:$2 sm:$0xf]
        %s1202 = scalar_lea.vmem [#allocation2], 18
        %v1203 = vld [vmem:[%s1202] ss:$2 sm:$0xf]
        %s1204 = scalar_lea.vmem [#allocation2], 34
        %v1205 = vld [vmem:[%s1204] ss:$2 sm:$0xf]
        %s1206 = scalar_lea.vmem [#allocation2], 50
        %v1207 = vld [vmem:[%s1206] ss:$2 sm:$0xf]
        %s1208 = scalar_lea.vmem [#allocation2], 66
        %v1209 = vld [vmem:[%s1208] ss:$2 sm:$0xf]
        %s1210 = scalar_lea.vmem [#allocation2], 82
        %v1211 = vld [vmem:[%s1210] ss:$2 sm:$0xf]
        %s1212 = scalar_lea.vmem [#allocation2], 98
        %v1213 = vld [vmem:[%s1212] ss:$2 sm:$0xf]
        %s1214 = scalar_lea.vmem [#allocation2], 114
        %v1215 = vld [vmem:[%s1214] ss:$2 sm:$0xf]
        %s1216 = scalar_lea.vmem [#allocation2], 130
        %v1217 = vld [vmem:[%s1216] ss:$2 sm:$0xf]
        %s1218 = scalar_lea.vmem [#allocation2], 146
        %v1219 = vld [vmem:[%s1218] ss:$2 sm:$0xf]
        %v1220 = vmax.f32 %v1190, %v1201
        %v1221 = vmax.f32 %v1191, %v1203
        %v1222 = vmax.f32 %v1192, %v1205
        %v1223 = vmax.f32 %v1193, %v1207
        %v1224 = vmax.f32 %v1194, %v1209
        %v1225 = vmax.f32 %v1195, %v1211
        %v1226 = vmax.f32 %v1196, %v1213
        %v1227 = vmax.f32 %v1197, %v1215
        %v1228 = vmax.f32 %v1198, %v1217
        %v1229 = vmax.f32 %v1199, %v1219
        %1230 = vst [vmem:[#allocation3] sm:$0xf] %v1220
        %1231 = vst [vmem:[#allocation3 + $0x4] sm:$0xf] %v1221
        %1232 = vst [vmem:[#allocation3 + $0x8] sm:$0xf] %v1222
        %1233 = vst [vmem:[#allocation3 + $0xc] sm:$0xf] %v1223
        %1234 = vst [vmem:[#allocation3 + $0x10] sm:$0xf] %v1224
        %1235 = vst [vmem:[#allocation3 + $0x14] sm:$0xf] %v1225
        %1236 = vst [vmem:[#allocation3 + $0x18] sm:$0xf] %v1226
        %1237 = vst [vmem:[#allocation3 + $0x1c] sm:$0xf] %v1227
        %1238 = vst [vmem:[#allocation3 + $0x20] sm:$0xf] %v1228
        %1239 = vst [vmem:[#allocation3 + $0x24] sm:$0xf] %v1229
        %v1240 = vld [vmem:[#allocation3] sm:$0xf]
        %v1241 = vld [vmem:[#allocation3 + $0x8] sm:$0xf]
        %v1242 = vld [vmem:[#allocation3 + $0x10] sm:$0xf]
        %v1243 = vld [vmem:[#allocation3 + $0x18] sm:$0xf]
        %s1244 = scalar_lea.vmem [#allocation3], 4
        %v1245 = vld [vmem:[%s1244] sm:$0xf]
        %v1246 = vld [vmem:[%s1244 + $0x8] sm:$0xf]
        %v1247 = vld [vmem:[%s1244 + $0x10] sm:$0xf]
        %v1248 = vld [vmem:[%s1244 + $0x18] sm:$0xf]
        %v1249 = vmax.f32 %v1240, %v1245
        %v1250 = vmax.f32 %v1241, %v1246
        %v1251 = vmax.f32 %v1242, %v1247
        %v1252 = vmax.f32 %v1243, %v1248
        %s1253 = scalar_lea.vmem [#allocation3], 8
        %v1254 = vld [vmem:[%s1253] sm:$0xf]
        %v1255 = vld [vmem:[%s1253 + $0x8] sm:$0xf]
        %v1256 = vld [vmem:[%s1253 + $0x10] sm:$0xf]
        %v1257 = vld [vmem:[%s1253 + $0x18] sm:$0xf]
        %v1258 = vmax.f32 %v1249, %v1254
        %v1259 = vmax.f32 %v1250, %v1255
        %v1260 = vmax.f32 %v1251, %v1256
        %v1261 = vmax.f32 %v1252, %v1257
        %1262 = vst [vmem:[%s203] sm:$0xf] %v1258
        %1263 = vst [vmem:[%s203 + $0x4] sm:$0xf] %v1259
        %1264 = vst [vmem:[%s203 + $0x8] sm:$0xf] %v1260
        %1265 = vst [vmem:[%s203 + $0xc] sm:$0xf] %v1261
        %s1266 = sand.u32 %s97, 1
        %s1267 = scalar_lea.sflag [#allocation6], %s1266
        %s1268 = sand.u32 %s97, 1
        %s1269 = smul.addr %s1268, 16
        %s1270 = scalar_lea.vmem [#allocation9], %s1269
        // Predicated region
        $region41: #{tpu_custom_call.1} parent=31 // pred_check
          %p1271 = pneg %p107
        $region42: #{tpu_custom_call.1} parent=31 // pred_check_branch
          %1273 = sbr.rel (%p1271) target = $region44
        $region43: #{tpu_custom_call.1} parent=31 // pred_region
          %s1275 = ssub.s32 256, 256
          %1276 = vsyncadd %s1267, %s1275
          %s1277 = smul.addr %s21, 4
          %s1278 = smul.addr %s1277, 64
          %s1279 = scalar_lea.hbm %s3, %s1278
          %s1280 = sshll.u32 %s1270, 4
          %s1281 = int_to_ptr.vmem [resolvable:$true] %s1280
          %1286 = dma.vmem_to_hbm [thread:$0]  %s1281, 256, %s1279, %s1267, 64, 64, 4
        $region44: #{tpu_custom_call.1} parent=31 // pred_fallthru
          _
      $region32: #{tpu_custom_call.1} parent=5 // pred_fallthru
        _
      %p1287 = scmp.le.s32.totalorder 2, %s16
      // Predicated region
      $region45: #{tpu_custom_call.1} parent=5 // pred_check
        %p1288 = pneg %p1287
      $region46: #{tpu_custom_call.1} parent=5 // pred_check_branch
        %1290 = sbr.rel (%p1288) target = $region48
      $region47: #{tpu_custom_call.1} parent=5 // pred_region
        %s1291 = ssub.s32 %s16, 2
        // Predicated region
        $region49: #{tpu_custom_call.1} parent=47 // pred_check
          %p1292 = pneg %p113
        $region50: #{tpu_custom_call.1} parent=47 // pred_check_branch
          %1294 = sbr.rel (%p1292) target = $region52
        $region51: #{tpu_custom_call.1} parent=47 // pred_region
          %s1295 = sand.u32 %s98, 1
          %s1296 = scalar_lea.sflag [#allocation6], %s1295
          %s1297 = sand.u32 %s98, 1
          %s1298 = smul.addr %s1297, 16
          %s1299 = scalar_lea.vmem [#allocation9], %s1298
          %1300 = dma.done %s1296, 256
        $region52: #{tpu_custom_call.1} parent=47 // pred_fallthru
          _
      $region48: #{tpu_custom_call.1} parent=5 // pred_fallthru
        _
    $region6: #{tpu_custom_call.1} parent=1 // loop_footer
      %s20 = sadd.s32 1, %s16
    $region7: #{tpu_custom_call.1} parent=1 // loop_footer_branch
      %15 = sbr.rel target = $region3
    $region8: #{tpu_custom_call.1} parent=1 // loop_exit
      _
    %1301 = vsyncpa [#allocation5], 1
    %s1302 = scalar_lea.sflag [#allocation5], 1
    %1303 = vsyncpa %s1302, 1
    %1304 = vsyncpa [#allocation8], 1
    %1305 = vsyncpa [#allocation6], 1
    %s1306 = scalar_lea.sflag [#allocation6], 1
    %1307 = vsyncpa %s1306, 1

</llo_original>
